<compile_context>
chip_gen: v5e
topology: v5e:2x2
jax: 0.10.0
libtpu: 0.0.40
codegen_flags: <defaults>
</compile_context>

<pallas_src>
import math

import numpy as np
import jax
import jax.numpy as jnp
from jax import lax
from jax.experimental import pallas as pl
from jax.experimental.pallas import tpu as pltpu

# ---- small config consistent with the module structure ----
B = 2              # batch
S = 8              # sequence length
BS = B * S
D = 32             # gpt2 hidden dim (synthetic small GPT-2)
N_HEAD = 2
HD = D // N_HEAD
N_LAYER = 2
MLP = 4 * D        # 128
VOCAB = 64
P_FEATS = 6        # num_prosody_feats
P_EMB = 16         # prosody_emb_dim
CLS_H = 128
N_CLS = 4
EPS = 1e-5
SCALE = 1.0 / math.sqrt(HD)

# head-slab row offsets
W1A_ROW = 8
W1B_ROW = W1A_ROW + D          # 40
W2_ROW = W1B_ROW + P_EMB       # 56
HEADW_ROWS = W2_ROW + CLS_H    # 184

# static (causal & same-batch-block) part of the attention mask, built once
_row = np.arange(BS)[:, None]
_col = np.arange(BS)[None, :]
STATIC_ALLOWED = jnp.asarray(
    (((_row // S) == (_col // S)) & ((_col % S) <= (_row % S))).astype(np.float32))


def _full_spec(shape):
    """BlockSpec whose block is the whole array (always layout-legal)."""
    return pl.BlockSpec(shape, lambda i: (0,) * len(shape))


def _layernorm(h, g, b):
    # variance via E[x^2] - mu^2: the two cross-lane reductions are independent
    mu = jnp.mean(h, axis=-1, keepdims=True)
    ms = jnp.mean(h * h, axis=-1, keepdims=True)
    var = ms - mu * mu
    return (h - mu) * lax.rsqrt(var + EPS) * g + b


# ---------------------------------------------------------------------------
# Fused kernel: N_LAYER GPT-2 blocks + ln_f + last-token gather + prosody head
# ---------------------------------------------------------------------------
def fused_forward_kernel(static_ok_ref, maskflat_ref, sel_ref, x_ref, pros_ref,
                         bigw_ref, smallp_ref, headw_ref, heads_ref, o_ref):
    x = x_ref[...]                                    # (BS, D) flattened batch

    # attention bias: static(causal & same-batch) AND key-padding -> 0 / -1e9
    allowed = static_ok_ref[...] * maskflat_ref[...]  # (BS,BS) * (1,BS) broadcast
    bias = (allowed - 1.0) * 1e9                      # 1 -> 0, 0 -> -1e9

    for l in range(N_LAYER):                          # static unroll
        ln1g = smallp_ref[l, 0:1, 0:D]
        ln1b = smallp_ref[l, 1:2, 0:D]
        ln2g = smallp_ref[l, 2:3, 0:D]
        ln2b = smallp_ref[l, 3:4, 0:D]
        bproj = smallp_ref[l, 4:5, :]                 # (1, 128)
        bfc = smallp_ref[l, 5:6, :]                   # (1, 128)
        bpr = smallp_ref[l, 6:7, 0:D]                 # (1, 32)
        bo = smallp_ref[l, 7:8, 0:D]                  # (1, 32)

        # --- self-attention (pre-LN), fused projections ---
        # proj lanes: [Q all-heads (0:32) | K all-heads (32:64) |
        #              (V@Wo) head0 (64:96) | (V@Wo) head1 (96:128)]
        h = _layernorm(x, ln1g, ln1b)
        proj = jnp.dot(h, bigw_ref[l, 0:D, :],
                       preferred_element_type=jnp.float32) + bproj        # (BS, 128)

        attn = bo                                     # (1, D), broadcasts on first add
        for hh in range(N_HEAD):                      # static, lane slices only
            qh = proj[:, hh * HD:(hh + 1) * HD]                           # (BS, HD)
            kh = proj[:, D + hh * HD:D + (hh + 1) * HD]                   # (BS, HD)
            voh = proj[:, 2 * D + hh * D:2 * D + (hh + 1) * D]            # (BS, D)
            s = lax.dot_general(qh, kh, (((1,), (1,)), ((), ())),
                                preferred_element_type=jnp.float32) * SCALE + bias
            m = jnp.max(s, axis=-1, keepdims=True)
            e = jnp.exp(s - m)
            p = e * pl.reciprocal(jnp.sum(e, axis=-1, keepdims=True), approx=True)
            # out-proj folded into voh (Wv_h @ Wo_h done at trace time)
            attn = attn + jnp.dot(p, voh, preferred_element_type=jnp.float32)
        x = x + attn

        # --- MLP (pre-LN, GPT-2 "gelu_new") ---
        h2 = _layernorm(x, ln2g, ln2b)
        f = jnp.dot(h2, bigw_ref[l, D:2 * D, :],
                    preferred_element_type=jnp.float32) + bfc             # (BS, 128)
        g = 0.5 * f * (1.0 + jnp.tanh(0.7978845608028654 * (f + 0.044715 * f * f * f)))
        x = x + jnp.dot(g, bigw_ref[l, 2 * D:2 * D + MLP, 0:D],
                        preferred_element_type=jnp.float32) + bpr

    # --- head: last real token gather (one-hot matmul on VMEM residents) ---
    rep = jnp.dot(sel_ref[...], x, preferred_element_type=jnp.float32)    # (B, D)

    # GPT-2 final LayerNorm (ln_f); per-token, so equivalent on gathered rows
    rep = _layernorm(rep, heads_ref[0:1, 0:D], heads_ref[1:2, 0:D])

    # TODO(synk): nn.Dropout is identity at inference; training-mode dropout not modeled.
    pemb = jnp.maximum(
        jnp.dot(pros_ref[...], headw_ref[0:P_FEATS, 0:P_EMB],
                preferred_element_type=jnp.float32) + heads_ref[2:3, 0:P_EMB],
        0.0)                                                              # prosody_proj
    # split-dot instead of lane-axis concat: [rep|pemb] @ W1 == rep@W1a + pemb@W1b
    h1 = jnp.maximum(
        jnp.dot(rep, headw_ref[W1A_ROW:W1A_ROW + D, :],
                preferred_element_type=jnp.float32)
        + jnp.dot(pemb, headw_ref[W1B_ROW:W1B_ROW + P_EMB, :],
                  preferred_element_type=jnp.float32)
        + heads_ref[3:4, :], 0.0)
    o_ref[...] = (jnp.dot(h1, headw_ref[W2_ROW:W2_ROW + CLS_H, 0:N_CLS],
                          preferred_element_type=jnp.float32)
                  + heads_ref[4:5, 0:N_CLS])


# ---------------------------------------------------------------------------
# Deterministic parameter init (synthetic GPT-2 + head)
# ---------------------------------------------------------------------------
def init_params(key):
    keys = jax.random.split(key, 40)
    it = iter(keys)

    def w(shape, scale=0.02):
        return (scale * jax.random.normal(next(it), shape)).astype(jnp.float32)

    ones = lambda shape: jnp.ones(shape, jnp.float32)
    zeros = lambda shape: jnp.zeros(shape, jnp.float32)

    return {
        "wte": w((VOCAB, D)), "wpe": w((S, D)),
        "ln1g": ones((N_LAYER, D)), "ln1b": zeros((N_LAYER, D)),
        "wq": w((N_LAYER, D, D)), "wk": w((N_LAYER, D, D)), "wv": w((N_LAYER, D, D)),
        "bq": zeros((N_LAYER, D)), "bk": zeros((N_LAYER, D)), "bv": zeros((N_LAYER, D)),
        "wo": w((N_LAYER, D, D)), "bo": zeros((N_LAYER, D)),
        "ln2g": ones((N_LAYER, D)), "ln2b": zeros((N_LAYER, D)),
        "wfc": w((N_LAYER, D, MLP)), "bfc": zeros((N_LAYER, MLP)),
        "wpr": w((N_LAYER, MLP, D)), "bpr": zeros((N_LAYER, D)),
        # head
        "lnfg": ones((D,)), "lnfb": zeros((D,)),
        "wp": w((P_FEATS, P_EMB)), "bp": zeros((P_EMB,)),      # prosody_proj
        "w1a": w((D, CLS_H)), "w1b": w((P_EMB, CLS_H)), "b1": zeros((CLS_H,)),
        "w2": w((CLS_H, N_CLS)), "b2": zeros((N_CLS,)),
    }


# ---------------------------------------------------------------------------
# Trace-time packing of parameters into a few lane-128-aligned slabs
# ---------------------------------------------------------------------------
def _padrow(v, width=128):
    v = jnp.asarray(v, jnp.float32).reshape(1, -1)
    return jnp.pad(v, ((0, 0), (0, width - v.shape[1])))


def _padmat(m, rows=None, cols=128):
    m = jnp.asarray(m, jnp.float32)
    r = m.shape[0] if rows is None else rows
    return jnp.pad(m, ((0, r - m.shape[0]), (0, cols - m.shape[1])))


def pack_params(p):
    big, small = [], []
    for l in range(N_LAYER):
        # fold per-head V and out-proj: Wvo_h = Wv[:, h] @ Wo[h_rows, :]
        # (bv@Wo folded into the projection bias; exact since softmax rows ~ 1,
        #  and bv is zero here anyway)
        cols = [p["wq"][l], p["wk"][l]]
        bcols = [p["bq"][l], p["bk"][l]]
        for hh in range(N_HEAD):
            sl = slice(hh * HD, (hh + 1) * HD)
            cols.append(p["wv"][l][:, sl] @ p["wo"][l][sl, :])   # (D, D)
            bcols.append(p["bv"][l][sl] @ p["wo"][l][sl, :])     # (D,)
        wproj = jnp.concatenate(cols, axis=1)                    # (D, 4D) = (32, 128)
        bproj = jnp.concatenate(bcols)                           # (128,)
        big.append(jnp.concatenate(
            [wproj, p["wfc"][l], _padmat(p["wpr"][l])], axis=0))  # (192, 128)
        small.append(jnp.concatenate([
            _padrow(p["ln1g"][l]), _padrow(p["ln1b"][l]),
            _padrow(p["ln2g"][l]), _padrow(p["ln2b"][l]),
            _padrow(bproj), _padrow(p["bfc"][l]),
            _padrow(p["bpr"][l]), _padrow(p["bo"][l])], axis=0))  # (8, 128)
    big_w = jnp.stack(big)        # (N_LAYER, 192, 128)
    small_p = jnp.stack(small)    # (N_LAYER, 8, 128)
    head_w = jnp.concatenate([
        _padmat(p["wp"], rows=8),     # rows 0:8,  lanes 0:16
        p["w1a"],                     # rows 8:40
        p["w1b"],                     # rows 40:56
        _padmat(p["w2"]),             # rows 56:184, lanes 0:4
    ], axis=0)                        # (184, 128)
    head_small = jnp.concatenate([
        _padrow(p["lnfg"]), _padrow(p["lnfb"]), _padrow(p["bp"]),
        _padrow(p["b1"]), _padrow(p["b2"]),
        jnp.zeros((3, 128), jnp.float32)], axis=0)               # (8, 128)
    return big_w, small_p, head_w, head_small


def forward(params, input_ids, attention_mask, prosody):
    # embedding gather + mask-derived glue stays in plain JAX (input prep)
    pos_ids = jnp.tile(jnp.arange(S), B)
    x_flat = (params["wte"][input_ids.reshape(-1)] + params["wpe"][pos_ids]).astype(jnp.float32)
    maskflat = attention_mask.reshape(1, BS).astype(jnp.float32)          # key padding mask
    last_idx = jnp.sum(attention_mask.astype(jnp.int32), axis=1) - 1      # (B,)  contiguous right-pad assumed
    target = last_idx + jnp.arange(B, dtype=jnp.int32) * S
    sel = (jnp.arange(BS, dtype=jnp.int32)[None, :] == target[:, None]).astype(jnp.float32)

    big_w, small_p, head_w, head_small = pack_params(params)
    args = (STATIC_ALLOWED, maskflat, sel, x_flat, prosody.astype(jnp.float32),
            big_w, small_p, head_w, head_small)

    logits = pl.pallas_call(
        fused_forward_kernel,
        out_shape=jax.ShapeDtypeStruct((B, N_CLS), jnp.float32),
        grid=(1,),
        in_specs=[_full_spec(a.shape) for a in args],
        out_specs=_full_spec((B, N_CLS)),
        compiler_params=pltpu.CompilerParams(dimension_semantics=("arbitrary",)),
    )(*args)
    return logits   # (B, 4); torch's .squeeze(1) is a no-op for size-4 dim


if __name__ == "__main__":
    key = jax.random.PRNGKey(0)
    pkey, ikey, prkey = jax.random.split(key, 3)
    params = init_params(pkey)

    input_ids = jax.random.randint(ikey, (B, S), 0, VOCAB)
    attention_mask = jnp.array([[1, 1, 1, 1, 1, 1, 0, 0],
                                [1, 1, 1, 1, 1, 1, 1, 1]], dtype=jnp.int32)
    prosody = jax.random.normal(prkey, (B, P_FEATS), dtype=jnp.float32)

    logits = forward(params, input_ids, attention_mask, prosody)
    jax.block_until_ready(logits)
    assert logits.shape == (B, N_CLS) and logits.dtype == jnp.float32
    assert bool(jnp.all(jnp.isfinite(logits)))
    print("KERNEL_OK")
</pallas_src>

<mosaic_0001>
module attributes {stable_mosaic.version = 11 : i64} {
  func.func @fused_forward_kernel(%arg0: i32, %arg1: memref<16x16xf32, #tpu.memory_space<vmem>>, %arg2: memref<1x16xf32, #tpu.memory_space<vmem>>, %arg3: memref<2x16xf32, #tpu.memory_space<vmem>>, %arg4: memref<16x32xf32, #tpu.memory_space<vmem>>, %arg5: memref<2x6xf32, #tpu.memory_space<vmem>>, %arg6: memref<2x192x128xf32, #tpu.memory_space<vmem>>, %arg7: memref<2x8x128xf32, #tpu.memory_space<vmem>>, %arg8: memref<184x128xf32, #tpu.memory_space<vmem>>, %arg9: memref<8x128xf32, #tpu.memory_space<vmem>>, %arg10: memref<2x4xf32, #tpu.memory_space<vmem>>) attributes {dimension_semantics = [#tpu.dimension_semantics<arbitrary>], iteration_bounds = array<i64: 1>, scalar_prefetch = 0 : i64, scratch_operands = 0 : i64, tpu.core_type = #tpu.core_type<tc>, window_params = [{pipeline_mode = #tpu.pipeline_mode<synchronous>, transform_indices = @transform_0, window_bounds = array<i64: 16, 16>}, {pipeline_mode = #tpu.pipeline_mode<synchronous>, transform_indices = @transform_1, window_bounds = array<i64: 1, 16>}, {pipeline_mode = #tpu.pipeline_mode<synchronous>, transform_indices = @transform_2, window_bounds = array<i64: 2, 16>}, {pipeline_mode = #tpu.pipeline_mode<synchronous>, transform_indices = @transform_3, window_bounds = array<i64: 16, 32>}, {pipeline_mode = #tpu.pipeline_mode<synchronous>, transform_indices = @transform_4, window_bounds = array<i64: 2, 6>}, {pipeline_mode = #tpu.pipeline_mode<synchronous>, transform_indices = @transform_5, window_bounds = array<i64: 2, 192, 128>}, {pipeline_mode = #tpu.pipeline_mode<synchronous>, transform_indices = @transform_6, window_bounds = array<i64: 2, 8, 128>}, {pipeline_mode = #tpu.pipeline_mode<synchronous>, transform_indices = @transform_7, window_bounds = array<i64: 184, 128>}, {pipeline_mode = #tpu.pipeline_mode<synchronous>, transform_indices = @transform_8, window_bounds = array<i64: 8, 128>}, {pipeline_mode = #tpu.pipeline_mode<synchronous>, transform_indices = @transform_9, window_bounds = array<i64: 2, 4>}]} {
    %c0 = arith.constant 0 : index
    %c0_0 = arith.constant 0 : index
    %0 = vector.load %arg4[%c0, %c0_0] : memref<16x32xf32, #tpu.memory_space<vmem>>, vector<16x32xf32>
    %c0_1 = arith.constant 0 : index
    %c0_2 = arith.constant 0 : index
    %1 = vector.load %arg1[%c0_1, %c0_2] : memref<16x16xf32, #tpu.memory_space<vmem>>, vector<16x16xf32>
    %c0_3 = arith.constant 0 : index
    %c0_4 = arith.constant 0 : index
    %2 = vector.load %arg2[%c0_3, %c0_4] : memref<1x16xf32, #tpu.memory_space<vmem>>, vector<1x16xf32>
    %3 = vector.broadcast %2 : vector<1x16xf32> to vector<16x16xf32>
    %4 = arith.mulf %1, %3 : vector<16x16xf32>
    %cst = arith.constant 1.000000e+00 : f32
    %5 = vector.broadcast %cst : f32 to vector<16x16xf32>
    %6 = arith.subf %4, %5 : vector<16x16xf32>
    %cst_5 = arith.constant 1.000000e+09 : f32
    %7 = vector.broadcast %cst_5 : f32 to vector<16x16xf32>
    %8 = arith.mulf %6, %7 : vector<16x16xf32>
    %c0_6 = arith.constant 0 : index
    %c0_7 = arith.constant 0 : index
    %c0_8 = arith.constant 0 : index
    %9 = vector.load %arg7[%c0_6, %c0_7, %c0_8] : memref<2x8x128xf32, #tpu.memory_space<vmem>>, vector<1x1x32xf32>
    %10 = vector.shape_cast %9 : vector<1x1x32xf32> to vector<1x32xf32>
    %c0_9 = arith.constant 0 : index
    %c1 = arith.constant 1 : index
    %c0_10 = arith.constant 0 : index
    %11 = vector.load %arg7[%c0_9, %c1, %c0_10] : memref<2x8x128xf32, #tpu.memory_space<vmem>>, vector<1x1x32xf32>
    %12 = vector.shape_cast %11 : vector<1x1x32xf32> to vector<1x32xf32>
    %c0_11 = arith.constant 0 : index
    %c2 = arith.constant 2 : index
    %c0_12 = arith.constant 0 : index
    %13 = vector.load %arg7[%c0_11, %c2, %c0_12] : memref<2x8x128xf32, #tpu.memory_space<vmem>>, vector<1x1x32xf32>
    %14 = vector.shape_cast %13 : vector<1x1x32xf32> to vector<1x32xf32>
    %c0_13 = arith.constant 0 : index
    %c3 = arith.constant 3 : index
    %c0_14 = arith.constant 0 : index
    %15 = vector.load %arg7[%c0_13, %c3, %c0_14] : memref<2x8x128xf32, #tpu.memory_space<vmem>>, vector<1x1x32xf32>
    %16 = vector.shape_cast %15 : vector<1x1x32xf32> to vector<1x32xf32>
    %c0_15 = arith.constant 0 : index
    %c4 = arith.constant 4 : index
    %c0_16 = arith.constant 0 : index
    %17 = vector.load %arg7[%c0_15, %c4, %c0_16] : memref<2x8x128xf32, #tpu.memory_space<vmem>>, vector<1x1x128xf32>
    %18 = vector.shape_cast %17 : vector<1x1x128xf32> to vector<1x128xf32>
    %c0_17 = arith.constant 0 : index
    %c5 = arith.constant 5 : index
    %c0_18 = arith.constant 0 : index
    %19 = vector.load %arg7[%c0_17, %c5, %c0_18] : memref<2x8x128xf32, #tpu.memory_space<vmem>>, vector<1x1x128xf32>
    %20 = vector.shape_cast %19 : vector<1x1x128xf32> to vector<1x128xf32>
    %c0_19 = arith.constant 0 : index
    %c6 = arith.constant 6 : index
    %c0_20 = arith.constant 0 : index
    %21 = vector.load %arg7[%c0_19, %c6, %c0_20] : memref<2x8x128xf32, #tpu.memory_space<vmem>>, vector<1x1x32xf32>
    %22 = vector.shape_cast %21 : vector<1x1x32xf32> to vector<1x32xf32>
    %c0_21 = arith.constant 0 : index
    %c7 = arith.constant 7 : index
    %c0_22 = arith.constant 0 : index
    %23 = vector.load %arg7[%c0_21, %c7, %c0_22] : memref<2x8x128xf32, #tpu.memory_space<vmem>>, vector<1x1x32xf32>
    %24 = vector.shape_cast %23 : vector<1x1x32xf32> to vector<1x32xf32>
    %cst_23 = arith.constant dense<0.000000e+00> : vector<16xf32>
    %25 = vector.multi_reduction <add>, %0, %cst_23 [1] : vector<16x32xf32> to vector<16xf32>
    %26 = vector.shape_cast %25 : vector<16xf32> to vector<16x1xf32>
    %cst_24 = arith.constant 3.200000e+01 : f32
    %27 = vector.broadcast %cst_24 : f32 to vector<16x1xf32>
    %28 = arith.divf %26, %27 : vector<16x1xf32>
    %29 = arith.mulf %0, %0 : vector<16x32xf32>
    %cst_25 = arith.constant dense<0.000000e+00> : vector<16xf32>
    %30 = vector.multi_reduction <add>, %29, %cst_25 [1] : vector<16x32xf32> to vector<16xf32>
    %31 = vector.shape_cast %30 : vector<16xf32> to vector<16x1xf32>
    %cst_26 = arith.constant 3.200000e+01 : f32
    %32 = vector.broadcast %cst_26 : f32 to vector<16x1xf32>
    %33 = arith.divf %31, %32 : vector<16x1xf32>
    %34 = arith.mulf %28, %28 : vector<16x1xf32>
    %35 = arith.subf %33, %34 : vector<16x1xf32>
    %36 = vector.broadcast %28 : vector<16x1xf32> to vector<16x32xf32>
    %37 = arith.subf %0, %36 : vector<16x32xf32>
    %cst_27 = arith.constant 9.99999974E-6 : f32
    %38 = vector.broadcast %cst_27 : f32 to vector<16x1xf32>
    %39 = arith.addf %35, %38 : vector<16x1xf32>
    %40 = math.rsqrt %39 : vector<16x1xf32>
    %41 = vector.broadcast %40 : vector<16x1xf32> to vector<16x32xf32>
    %42 = arith.mulf %37, %41 : vector<16x32xf32>
    %43 = vector.broadcast %10 : vector<1x32xf32> to vector<16x32xf32>
    %44 = arith.mulf %42, %43 : vector<16x32xf32>
    %45 = vector.broadcast %12 : vector<1x32xf32> to vector<16x32xf32>
    %46 = arith.addf %44, %45 : vector<16x32xf32>
    %c0_28 = arith.constant 0 : index
    %c0_29 = arith.constant 0 : index
    %c0_30 = arith.constant 0 : index
    %47 = vector.load %arg6[%c0_28, %c0_29, %c0_30] : memref<2x192x128xf32, #tpu.memory_space<vmem>>, vector<1x32x128xf32>
    %48 = vector.shape_cast %47 : vector<1x32x128xf32> to vector<32x128xf32>
    %cst_31 = arith.constant dense<0.000000e+00> : vector<16x128xf32>
    %49 = tpu.matmul %46, %48, %cst_31 {dimension_numbers = #tpu.dot_dimension_numbers<[1], [0], [0], [1], [0, 0, 1, 1], [], []>} : vector<16x32xf32>, vector<32x128xf32>, vector<16x128xf32> -> vector<16x128xf32>
    %50 = vector.broadcast %18 : vector<1x128xf32> to vector<16x128xf32>
    %51 = arith.addf %49, %50 : vector<16x128xf32>
    %52 = vector.extract_strided_slice %51 {offsets = [0, 0], sizes = [16, 16], strides = [1, 1]} : vector<16x128xf32> to vector<16x16xf32>
    %53 = vector.extract_strided_slice %51 {offsets = [0, 32], sizes = [16, 16], strides = [1, 1]} : vector<16x128xf32> to vector<16x16xf32>
    %54 = vector.extract_strided_slice %51 {offsets = [0, 64], sizes = [16, 32], strides = [1, 1]} : vector<16x128xf32> to vector<16x32xf32>
    %cst_32 = arith.constant dense<0.000000e+00> : vector<16x16xf32>
    %55 = tpu.matmul %52, %53, %cst_32 {dimension_numbers = #tpu.dot_dimension_numbers<[1], [1], [0], [0], [0, 0, 1, 0], [], []>} : vector<16x16xf32>, vector<16x16xf32>, vector<16x16xf32> -> vector<16x16xf32>
    %cst_33 = arith.constant 2.500000e-01 : f32
    %56 = vector.broadcast %cst_33 : f32 to vector<16x16xf32>
    %57 = arith.mulf %55, %56 : vector<16x16xf32>
    %58 = arith.addf %57, %8 : vector<16x16xf32>
    %cst_34 = arith.constant dense<0xFF800000> : vector<16xf32>
    %59 = vector.multi_reduction <maximumf>, %58, %cst_34 [1] : vector<16x16xf32> to vector<16xf32>
    %60 = vector.shape_cast %59 : vector<16xf32> to vector<16x1xf32>
    %61 = vector.broadcast %60 : vector<16x1xf32> to vector<16x16xf32>
    %62 = arith.subf %58, %61 : vector<16x16xf32>
    %63 = math.exp %62 : vector<16x16xf32>
    %cst_35 = arith.constant dense<0.000000e+00> : vector<16xf32>
    %64 = vector.multi_reduction <add>, %63, %cst_35 [1] : vector<16x16xf32> to vector<16xf32>
    %65 = vector.shape_cast %64 : vector<16xf32> to vector<16x1xf32>
    %66 = tpu.reciprocal %65 {approx = true} : vector<16x1xf32> -> vector<16x1xf32>
    %67 = vector.broadcast %66 : vector<16x1xf32> to vector<16x16xf32>
    %68 = arith.mulf %63, %67 : vector<16x16xf32>
    %cst_36 = arith.constant dense<0.000000e+00> : vector<16x32xf32>
    %69 = tpu.matmul %68, %54, %cst_36 {dimension_numbers = #tpu.dot_dimension_numbers<[1], [0], [0], [1], [0, 0, 1, 1], [], []>} : vector<16x16xf32>, vector<16x32xf32>, vector<16x32xf32> -> vector<16x32xf32>
    %70 = vector.broadcast %24 : vector<1x32xf32> to vector<16x32xf32>
    %71 = arith.addf %70, %69 : vector<16x32xf32>
    %72 = vector.extract_strided_slice %51 {offsets = [0, 16], sizes = [16, 16], strides = [1, 1]} : vector<16x128xf32> to vector<16x16xf32>
    %73 = vector.extract_strided_slice %51 {offsets = [0, 48], sizes = [16, 16], strides = [1, 1]} : vector<16x128xf32> to vector<16x16xf32>
    %74 = vector.extract_strided_slice %51 {offsets = [0, 96], sizes = [16, 32], strides = [1, 1]} : vector<16x128xf32> to vector<16x32xf32>
    %cst_37 = arith.constant dense<0.000000e+00> : vector<16x16xf32>
    %75 = tpu.matmul %72, %73, %cst_37 {dimension_numbers = #tpu.dot_dimension_numbers<[1], [1], [0], [0], [0, 0, 1, 0], [], []>} : vector<16x16xf32>, vector<16x16xf32>, vector<16x16xf32> -> vector<16x16xf32>
    %cst_38 = arith.constant 2.500000e-01 : f32
    %76 = vector.broadcast %cst_38 : f32 to vector<16x16xf32>
    %77 = arith.mulf %75, %76 : vector<16x16xf32>
    %78 = arith.addf %77, %8 : vector<16x16xf32>
    %cst_39 = arith.constant dense<0xFF800000> : vector<16xf32>
    %79 = vector.multi_reduction <maximumf>, %78, %cst_39 [1] : vector<16x16xf32> to vector<16xf32>
    %80 = vector.shape_cast %79 : vector<16xf32> to vector<16x1xf32>
    %81 = vector.broadcast %80 : vector<16x1xf32> to vector<16x16xf32>
    %82 = arith.subf %78, %81 : vector<16x16xf32>
    %83 = math.exp %82 : vector<16x16xf32>
    %cst_40 = arith.constant dense<0.000000e+00> : vector<16xf32>
    %84 = vector.multi_reduction <add>, %83, %cst_40 [1] : vector<16x16xf32> to vector<16xf32>
    %85 = vector.shape_cast %84 : vector<16xf32> to vector<16x1xf32>
    %86 = tpu.reciprocal %85 {approx = true} : vector<16x1xf32> -> vector<16x1xf32>
    %87 = vector.broadcast %86 : vector<16x1xf32> to vector<16x16xf32>
    %88 = arith.mulf %83, %87 : vector<16x16xf32>
    %cst_41 = arith.constant dense<0.000000e+00> : vector<16x32xf32>
    %89 = tpu.matmul %88, %74, %cst_41 {dimension_numbers = #tpu.dot_dimension_numbers<[1], [0], [0], [1], [0, 0, 1, 1], [], []>} : vector<16x16xf32>, vector<16x32xf32>, vector<16x32xf32> -> vector<16x32xf32>
    %90 = arith.addf %71, %89 : vector<16x32xf32>
    %91 = arith.addf %0, %90 : vector<16x32xf32>
    %cst_42 = arith.constant dense<0.000000e+00> : vector<16xf32>
    %92 = vector.multi_reduction <add>, %91, %cst_42 [1] : vector<16x32xf32> to vector<16xf32>
    %93 = vector.shape_cast %92 : vector<16xf32> to vector<16x1xf32>
    %cst_43 = arith.constant 3.200000e+01 : f32
    %94 = vector.broadcast %cst_43 : f32 to vector<16x1xf32>
    %95 = arith.divf %93, %94 : vector<16x1xf32>
    %96 = arith.mulf %91, %91 : vector<16x32xf32>
    %cst_44 = arith.constant dense<0.000000e+00> : vector<16xf32>
    %97 = vector.multi_reduction <add>, %96, %cst_44 [1] : vector<16x32xf32> to vector<16xf32>
    %98 = vector.shape_cast %97 : vector<16xf32> to vector<16x1xf32>
    %cst_45 = arith.constant 3.200000e+01 : f32
    %99 = vector.broadcast %cst_45 : f32 to vector<16x1xf32>
    %100 = arith.divf %98, %99 : vector<16x1xf32>
    %101 = arith.mulf %95, %95 : vector<16x1xf32>
    %102 = arith.subf %100, %101 : vector<16x1xf32>
    %103 = vector.broadcast %95 : vector<16x1xf32> to vector<16x32xf32>
    %104 = arith.subf %91, %103 : vector<16x32xf32>
    %cst_46 = arith.constant 9.99999974E-6 : f32
    %105 = vector.broadcast %cst_46 : f32 to vector<16x1xf32>
    %106 = arith.addf %102, %105 : vector<16x1xf32>
    %107 = math.rsqrt %106 : vector<16x1xf32>
    %108 = vector.broadcast %107 : vector<16x1xf32> to vector<16x32xf32>
    %109 = arith.mulf %104, %108 : vector<16x32xf32>
    %110 = vector.broadcast %14 : vector<1x32xf32> to vector<16x32xf32>
    %111 = arith.mulf %109, %110 : vector<16x32xf32>
    %112 = vector.broadcast %16 : vector<1x32xf32> to vector<16x32xf32>
    %113 = arith.addf %111, %112 : vector<16x32xf32>
    %c0_47 = arith.constant 0 : index
    %c32 = arith.constant 32 : index
    %c0_48 = arith.constant 0 : index
    %114 = vector.load %arg6[%c0_47, %c32, %c0_48] : memref<2x192x128xf32, #tpu.memory_space<vmem>>, vector<1x32x128xf32>
    %115 = vector.shape_cast %114 : vector<1x32x128xf32> to vector<32x128xf32>
    %cst_49 = arith.constant dense<0.000000e+00> : vector<16x128xf32>
    %116 = tpu.matmul %113, %115, %cst_49 {dimension_numbers = #tpu.dot_dimension_numbers<[1], [0], [0], [1], [0, 0, 1, 1], [], []>} : vector<16x32xf32>, vector<32x128xf32>, vector<16x128xf32> -> vector<16x128xf32>
    %117 = vector.broadcast %20 : vector<1x128xf32> to vector<16x128xf32>
    %118 = arith.addf %116, %117 : vector<16x128xf32>
    %cst_50 = arith.constant 5.000000e-01 : f32
    %119 = vector.broadcast %cst_50 : f32 to vector<16x128xf32>
    %120 = arith.mulf %119, %118 : vector<16x128xf32>
    %cst_51 = arith.constant 4.471500e-02 : f32
    %121 = vector.broadcast %cst_51 : f32 to vector<16x128xf32>
    %122 = arith.mulf %121, %118 : vector<16x128xf32>
    %123 = arith.mulf %122, %118 : vector<16x128xf32>
    %124 = arith.mulf %123, %118 : vector<16x128xf32>
    %125 = arith.addf %118, %124 : vector<16x128xf32>
    %cst_52 = arith.constant 0.797884583 : f32
    %126 = vector.broadcast %cst_52 : f32 to vector<16x128xf32>
    %127 = arith.mulf %126, %125 : vector<16x128xf32>
    %128 = math.tanh %127 : vector<16x128xf32>
    %cst_53 = arith.constant 1.000000e+00 : f32
    %129 = vector.broadcast %cst_53 : f32 to vector<16x128xf32>
    %130 = arith.addf %129, %128 : vector<16x128xf32>
    %131 = arith.mulf %120, %130 : vector<16x128xf32>
    %c0_54 = arith.constant 0 : index
    %c64 = arith.constant 64 : index
    %c0_55 = arith.constant 0 : index
    %132 = vector.load %arg6[%c0_54, %c64, %c0_55] : memref<2x192x128xf32, #tpu.memory_space<vmem>>, vector<1x128x32xf32>
    %133 = vector.shape_cast %132 : vector<1x128x32xf32> to vector<128x32xf32>
    %cst_56 = arith.constant dense<0.000000e+00> : vector<16x32xf32>
    %134 = tpu.matmul %131, %133, %cst_56 {dimension_numbers = #tpu.dot_dimension_numbers<[1], [0], [0], [1], [0, 0, 1, 1], [], []>} : vector<16x128xf32>, vector<128x32xf32>, vector<16x32xf32> -> vector<16x32xf32>
    %135 = arith.addf %91, %134 : vector<16x32xf32>
    %136 = vector.broadcast %22 : vector<1x32xf32> to vector<16x32xf32>
    %137 = arith.addf %135, %136 : vector<16x32xf32>
    %c1_57 = arith.constant 1 : index
    %c0_58 = arith.constant 0 : index
    %c0_59 = arith.constant 0 : index
    %138 = vector.load %arg7[%c1_57, %c0_58, %c0_59] : memref<2x8x128xf32, #tpu.memory_space<vmem>>, vector<1x1x32xf32>
    %139 = vector.shape_cast %138 : vector<1x1x32xf32> to vector<1x32xf32>
    %c1_60 = arith.constant 1 : index
    %c1_61 = arith.constant 1 : index
    %c0_62 = arith.constant 0 : index
    %140 = vector.load %arg7[%c1_60, %c1_61, %c0_62] : memref<2x8x128xf32, #tpu.memory_space<vmem>>, vector<1x1x32xf32>
    %141 = vector.shape_cast %140 : vector<1x1x32xf32> to vector<1x32xf32>
    %c1_63 = arith.constant 1 : index
    %c2_64 = arith.constant 2 : index
    %c0_65 = arith.constant 0 : index
    %142 = vector.load %arg7[%c1_63, %c2_64, %c0_65] : memref<2x8x128xf32, #tpu.memory_space<vmem>>, vector<1x1x32xf32>
    %143 = vector.shape_cast %142 : vector<1x1x32xf32> to vector<1x32xf32>
    %c1_66 = arith.constant 1 : index
    %c3_67 = arith.constant 3 : index
    %c0_68 = arith.constant 0 : index
    %144 = vector.load %arg7[%c1_66, %c3_67, %c0_68] : memref<2x8x128xf32, #tpu.memory_space<vmem>>, vector<1x1x32xf32>
    %145 = vector.shape_cast %144 : vector<1x1x32xf32> to vector<1x32xf32>
    %c1_69 = arith.constant 1 : index
    %c4_70 = arith.constant 4 : index
    %c0_71 = arith.constant 0 : index
    %146 = vector.load %arg7[%c1_69, %c4_70, %c0_71] : memref<2x8x128xf32, #tpu.memory_space<vmem>>, vector<1x1x128xf32>
    %147 = vector.shape_cast %146 : vector<1x1x128xf32> to vector<1x128xf32>
    %c1_72 = arith.constant 1 : index
    %c5_73 = arith.constant 5 : index
    %c0_74 = arith.constant 0 : index
    %148 = vector.load %arg7[%c1_72, %c5_73, %c0_74] : memref<2x8x128xf32, #tpu.memory_space<vmem>>, vector<1x1x128xf32>
    %149 = vector.shape_cast %148 : vector<1x1x128xf32> to vector<1x128xf32>
    %c1_75 = arith.constant 1 : index
    %c6_76 = arith.constant 6 : index
    %c0_77 = arith.constant 0 : index
    %150 = vector.load %arg7[%c1_75, %c6_76, %c0_77] : memref<2x8x128xf32, #tpu.memory_space<vmem>>, vector<1x1x32xf32>
    %151 = vector.shape_cast %150 : vector<1x1x32xf32> to vector<1x32xf32>
    %c1_78 = arith.constant 1 : index
    %c7_79 = arith.constant 7 : index
    %c0_80 = arith.constant 0 : index
    %152 = vector.load %arg7[%c1_78, %c7_79, %c0_80] : memref<2x8x128xf32, #tpu.memory_space<vmem>>, vector<1x1x32xf32>
    %153 = vector.shape_cast %152 : vector<1x1x32xf32> to vector<1x32xf32>
    %cst_81 = arith.constant dense<0.000000e+00> : vector<16xf32>
    %154 = vector.multi_reduction <add>, %137, %cst_81 [1] : vector<16x32xf32> to vector<16xf32>
    %155 = vector.shape_cast %154 : vector<16xf32> to vector<16x1xf32>
    %cst_82 = arith.constant 3.200000e+01 : f32
    %156 = vector.broadcast %cst_82 : f32 to vector<16x1xf32>
    %157 = arith.divf %155, %156 : vector<16x1xf32>
    %158 = arith.mulf %137, %137 : vector<16x32xf32>
    %cst_83 = arith.constant dense<0.000000e+00> : vector<16xf32>
    %159 = vector.multi_reduction <add>, %158, %cst_83 [1] : vector<16x32xf32> to vector<16xf32>
    %160 = vector.shape_cast %159 : vector<16xf32> to vector<16x1xf32>
    %cst_84 = arith.constant 3.200000e+01 : f32
    %161 = vector.broadcast %cst_84 : f32 to vector<16x1xf32>
    %162 = arith.divf %160, %161 : vector<16x1xf32>
    %163 = arith.mulf %157, %157 : vector<16x1xf32>
    %164 = arith.subf %162, %163 : vector<16x1xf32>
    %165 = vector.broadcast %157 : vector<16x1xf32> to vector<16x32xf32>
    %166 = arith.subf %137, %165 : vector<16x32xf32>
    %cst_85 = arith.constant 9.99999974E-6 : f32
    %167 = vector.broadcast %cst_85 : f32 to vector<16x1xf32>
    %168 = arith.addf %164, %167 : vector<16x1xf32>
    %169 = math.rsqrt %168 : vector<16x1xf32>
    %170 = vector.broadcast %169 : vector<16x1xf32> to vector<16x32xf32>
    %171 = arith.mulf %166, %170 : vector<16x32xf32>
    %172 = vector.broadcast %139 : vector<1x32xf32> to vector<16x32xf32>
    %173 = arith.mulf %171, %172 : vector<16x32xf32>
    %174 = vector.broadcast %141 : vector<1x32xf32> to vector<16x32xf32>
    %175 = arith.addf %173, %174 : vector<16x32xf32>
    %c1_86 = arith.constant 1 : index
    %c0_87 = arith.constant 0 : index
    %c0_88 = arith.constant 0 : index
    %176 = vector.load %arg6[%c1_86, %c0_87, %c0_88] : memref<2x192x128xf32, #tpu.memory_space<vmem>>, vector<1x32x128xf32>
    %177 = vector.shape_cast %176 : vector<1x32x128xf32> to vector<32x128xf32>
    %cst_89 = arith.constant dense<0.000000e+00> : vector<16x128xf32>
    %178 = tpu.matmul %175, %177, %cst_89 {dimension_numbers = #tpu.dot_dimension_numbers<[1], [0], [0], [1], [0, 0, 1, 1], [], []>} : vector<16x32xf32>, vector<32x128xf32>, vector<16x128xf32> -> vector<16x128xf32>
    %179 = vector.broadcast %147 : vector<1x128xf32> to vector<16x128xf32>
    %180 = arith.addf %178, %179 : vector<16x128xf32>
    %181 = vector.extract_strided_slice %180 {offsets = [0, 0], sizes = [16, 16], strides = [1, 1]} : vector<16x128xf32> to vector<16x16xf32>
    %182 = vector.extract_strided_slice %180 {offsets = [0, 32], sizes = [16, 16], strides = [1, 1]} : vector<16x128xf32> to vector<16x16xf32>
    %183 = vector.extract_strided_slice %180 {offsets = [0, 64], sizes = [16, 32], strides = [1, 1]} : vector<16x128xf32> to vector<16x32xf32>
    %cst_90 = arith.constant dense<0.000000e+00> : vector<16x16xf32>
    %184 = tpu.matmul %181, %182, %cst_90 {dimension_numbers = #tpu.dot_dimension_numbers<[1], [1], [0], [0], [0, 0, 1, 0], [], []>} : vector<16x16xf32>, vector<16x16xf32>, vector<16x16xf32> -> vector<16x16xf32>
    %cst_91 = arith.constant 2.500000e-01 : f32
    %185 = vector.broadcast %cst_91 : f32 to vector<16x16xf32>
    %186 = arith.mulf %184, %185 : vector<16x16xf32>
    %187 = arith.addf %186, %8 : vector<16x16xf32>
    %cst_92 = arith.constant dense<0xFF800000> : vector<16xf32>
    %188 = vector.multi_reduction <maximumf>, %187, %cst_92 [1] : vector<16x16xf32> to vector<16xf32>
    %189 = vector.shape_cast %188 : vector<16xf32> to vector<16x1xf32>
    %190 = vector.broadcast %189 : vector<16x1xf32> to vector<16x16xf32>
    %191 = arith.subf %187, %190 : vector<16x16xf32>
    %192 = math.exp %191 : vector<16x16xf32>
    %cst_93 = arith.constant dense<0.000000e+00> : vector<16xf32>
    %193 = vector.multi_reduction <add>, %192, %cst_93 [1] : vector<16x16xf32> to vector<16xf32>
    %194 = vector.shape_cast %193 : vector<16xf32> to vector<16x1xf32>
    %195 = tpu.reciprocal %194 {approx = true} : vector<16x1xf32> -> vector<16x1xf32>
    %196 = vector.broadcast %195 : vector<16x1xf32> to vector<16x16xf32>
    %197 = arith.mulf %192, %196 : vector<16x16xf32>
    %cst_94 = arith.constant dense<0.000000e+00> : vector<16x32xf32>
    %198 = tpu.matmul %197, %183, %cst_94 {dimension_numbers = #tpu.dot_dimension_numbers<[1], [0], [0], [1], [0, 0, 1, 1], [], []>} : vector<16x16xf32>, vector<16x32xf32>, vector<16x32xf32> -> vector<16x32xf32>
    %199 = vector.broadcast %153 : vector<1x32xf32> to vector<16x32xf32>
    %200 = arith.addf %199, %198 : vector<16x32xf32>
    %201 = vector.extract_strided_slice %180 {offsets = [0, 16], sizes = [16, 16], strides = [1, 1]} : vector<16x128xf32> to vector<16x16xf32>
    %202 = vector.extract_strided_slice %180 {offsets = [0, 48], sizes = [16, 16], strides = [1, 1]} : vector<16x128xf32> to vector<16x16xf32>
    %203 = vector.extract_strided_slice %180 {offsets = [0, 96], sizes = [16, 32], strides = [1, 1]} : vector<16x128xf32> to vector<16x32xf32>
    %cst_95 = arith.constant dense<0.000000e+00> : vector<16x16xf32>
    %204 = tpu.matmul %201, %202, %cst_95 {dimension_numbers = #tpu.dot_dimension_numbers<[1], [1], [0], [0], [0, 0, 1, 0], [], []>} : vector<16x16xf32>, vector<16x16xf32>, vector<16x16xf32> -> vector<16x16xf32>
    %cst_96 = arith.constant 2.500000e-01 : f32
    %205 = vector.broadcast %cst_96 : f32 to vector<16x16xf32>
    %206 = arith.mulf %204, %205 : vector<16x16xf32>
    %207 = arith.addf %206, %8 : vector<16x16xf32>
    %cst_97 = arith.constant dense<0xFF800000> : vector<16xf32>
    %208 = vector.multi_reduction <maximumf>, %207, %cst_97 [1] : vector<16x16xf32> to vector<16xf32>
    %209 = vector.shape_cast %208 : vector<16xf32> to vector<16x1xf32>
    %210 = vector.broadcast %209 : vector<16x1xf32> to vector<16x16xf32>
    %211 = arith.subf %207, %210 : vector<16x16xf32>
    %212 = math.exp %211 : vector<16x16xf32>
    %cst_98 = arith.constant dense<0.000000e+00> : vector<16xf32>
    %213 = vector.multi_reduction <add>, %212, %cst_98 [1] : vector<16x16xf32> to vector<16xf32>
    %214 = vector.shape_cast %213 : vector<16xf32> to vector<16x1xf32>
    %215 = tpu.reciprocal %214 {approx = true} : vector<16x1xf32> -> vector<16x1xf32>
    %216 = vector.broadcast %215 : vector<16x1xf32> to vector<16x16xf32>
    %217 = arith.mulf %212, %216 : vector<16x16xf32>
    %cst_99 = arith.constant dense<0.000000e+00> : vector<16x32xf32>
    %218 = tpu.matmul %217, %203, %cst_99 {dimension_numbers = #tpu.dot_dimension_numbers<[1], [0], [0], [1], [0, 0, 1, 1], [], []>} : vector<16x16xf32>, vector<16x32xf32>, vector<16x32xf32> -> vector<16x32xf32>
    %219 = arith.addf %200, %218 : vector<16x32xf32>
    %220 = arith.addf %137, %219 : vector<16x32xf32>
    %cst_100 = arith.constant dense<0.000000e+00> : vector<16xf32>
    %221 = vector.multi_reduction <add>, %220, %cst_100 [1] : vector<16x32xf32> to vector<16xf32>
    %222 = vector.shape_cast %221 : vector<16xf32> to vector<16x1xf32>
    %cst_101 = arith.constant 3.200000e+01 : f32
    %223 = vector.broadcast %cst_101 : f32 to vector<16x1xf32>
    %224 = arith.divf %222, %223 : vector<16x1xf32>
    %225 = arith.mulf %220, %220 : vector<16x32xf32>
    %cst_102 = arith.constant dense<0.000000e+00> : vector<16xf32>
    %226 = vector.multi_reduction <add>, %225, %cst_102 [1] : vector<16x32xf32> to vector<16xf32>
    %227 = vector.shape_cast %226 : vector<16xf32> to vector<16x1xf32>
    %cst_103 = arith.constant 3.200000e+01 : f32
    %228 = vector.broadcast %cst_103 : f32 to vector<16x1xf32>
    %229 = arith.divf %227, %228 : vector<16x1xf32>
    %230 = arith.mulf %224, %224 : vector<16x1xf32>
    %231 = arith.subf %229, %230 : vector<16x1xf32>
    %232 = vector.broadcast %224 : vector<16x1xf32> to vector<16x32xf32>
    %233 = arith.subf %220, %232 : vector<16x32xf32>
    %cst_104 = arith.constant 9.99999974E-6 : f32
    %234 = vector.broadcast %cst_104 : f32 to vector<16x1xf32>
    %235 = arith.addf %231, %234 : vector<16x1xf32>
    %236 = math.rsqrt %235 : vector<16x1xf32>
    %237 = vector.broadcast %236 : vector<16x1xf32> to vector<16x32xf32>
    %238 = arith.mulf %233, %237 : vector<16x32xf32>
    %239 = vector.broadcast %143 : vector<1x32xf32> to vector<16x32xf32>
    %240 = arith.mulf %238, %239 : vector<16x32xf32>
    %241 = vector.broadcast %145 : vector<1x32xf32> to vector<16x32xf32>
    %242 = arith.addf %240, %241 : vector<16x32xf32>
    %c1_105 = arith.constant 1 : index
    %c32_106 = arith.constant 32 : index
    %c0_107 = arith.constant 0 : index
    %243 = vector.load %arg6[%c1_105, %c32_106, %c0_107] : memref<2x192x128xf32, #tpu.memory_space<vmem>>, vector<1x32x128xf32>
    %244 = vector.shape_cast %243 : vector<1x32x128xf32> to vector<32x128xf32>
    %cst_108 = arith.constant dense<0.000000e+00> : vector<16x128xf32>
    %245 = tpu.matmul %242, %244, %cst_108 {dimension_numbers = #tpu.dot_dimension_numbers<[1], [0], [0], [1], [0, 0, 1, 1], [], []>} : vector<16x32xf32>, vector<32x128xf32>, vector<16x128xf32> -> vector<16x128xf32>
    %246 = vector.broadcast %149 : vector<1x128xf32> to vector<16x128xf32>
    %247 = arith.addf %245, %246 : vector<16x128xf32>
    %cst_109 = arith.constant 5.000000e-01 : f32
    %248 = vector.broadcast %cst_109 : f32 to vector<16x128xf32>
    %249 = arith.mulf %248, %247 : vector<16x128xf32>
    %cst_110 = arith.constant 4.471500e-02 : f32
    %250 = vector.broadcast %cst_110 : f32 to vector<16x128xf32>
    %251 = arith.mulf %250, %247 : vector<16x128xf32>
    %252 = arith.mulf %251, %247 : vector<16x128xf32>
    %253 = arith.mulf %252, %247 : vector<16x128xf32>
    %254 = arith.addf %247, %253 : vector<16x128xf32>
    %cst_111 = arith.constant 0.797884583 : f32
    %255 = vector.broadcast %cst_111 : f32 to vector<16x128xf32>
    %256 = arith.mulf %255, %254 : vector<16x128xf32>
    %257 = math.tanh %256 : vector<16x128xf32>
    %cst_112 = arith.constant 1.000000e+00 : f32
    %258 = vector.broadcast %cst_112 : f32 to vector<16x128xf32>
    %259 = arith.addf %258, %257 : vector<16x128xf32>
    %260 = arith.mulf %249, %259 : vector<16x128xf32>
    %c1_113 = arith.constant 1 : index
    %c64_114 = arith.constant 64 : index
    %c0_115 = arith.constant 0 : index
    %261 = vector.load %arg6[%c1_113, %c64_114, %c0_115] : memref<2x192x128xf32, #tpu.memory_space<vmem>>, vector<1x128x32xf32>
    %262 = vector.shape_cast %261 : vector<1x128x32xf32> to vector<128x32xf32>
    %cst_116 = arith.constant dense<0.000000e+00> : vector<16x32xf32>
    %263 = tpu.matmul %260, %262, %cst_116 {dimension_numbers = #tpu.dot_dimension_numbers<[1], [0], [0], [1], [0, 0, 1, 1], [], []>} : vector<16x128xf32>, vector<128x32xf32>, vector<16x32xf32> -> vector<16x32xf32>
    %264 = arith.addf %220, %263 : vector<16x32xf32>
    %265 = vector.broadcast %151 : vector<1x32xf32> to vector<16x32xf32>
    %266 = arith.addf %264, %265 : vector<16x32xf32>
    %c0_117 = arith.constant 0 : index
    %c0_118 = arith.constant 0 : index
    %267 = vector.load %arg3[%c0_117, %c0_118] : memref<2x16xf32, #tpu.memory_space<vmem>>, vector<2x16xf32>
    %cst_119 = arith.constant dense<0.000000e+00> : vector<2x32xf32>
    %268 = tpu.matmul %267, %266, %cst_119 {dimension_numbers = #tpu.dot_dimension_numbers<[1], [0], [0], [1], [0, 0, 1, 1], [], []>} : vector<2x16xf32>, vector<16x32xf32>, vector<2x32xf32> -> vector<2x32xf32>
    %c0_120 = arith.constant 0 : index
    %c0_121 = arith.constant 0 : index
    %269 = vector.load %arg9[%c0_120, %c0_121] : memref<8x128xf32, #tpu.memory_space<vmem>>, vector<1x32xf32>
    %c1_122 = arith.constant 1 : index
    %c0_123 = arith.constant 0 : index
    %270 = vector.load %arg9[%c1_122, %c0_123] : memref<8x128xf32, #tpu.memory_space<vmem>>, vector<1x32xf32>
    %cst_124 = arith.constant dense<0.000000e+00> : vector<2xf32>
    %271 = vector.multi_reduction <add>, %268, %cst_124 [1] : vector<2x32xf32> to vector<2xf32>
    %272 = vector.shape_cast %271 : vector<2xf32> to vector<2x1xf32>
    %cst_125 = arith.constant 3.200000e+01 : f32
    %273 = vector.broadcast %cst_125 : f32 to vector<2x1xf32>
    %274 = arith.divf %272, %273 : vector<2x1xf32>
    %275 = arith.mulf %268, %268 : vector<2x32xf32>
    %cst_126 = arith.constant dense<0.000000e+00> : vector<2xf32>
    %276 = vector.multi_reduction <add>, %275, %cst_126 [1] : vector<2x32xf32> to vector<2xf32>
    %277 = vector.shape_cast %276 : vector<2xf32> to vector<2x1xf32>
    %cst_127 = arith.constant 3.200000e+01 : f32
    %278 = vector.broadcast %cst_127 : f32 to vector<2x1xf32>
    %279 = arith.divf %277, %278 : vector<2x1xf32>
    %280 = arith.mulf %274, %274 : vector<2x1xf32>
    %281 = arith.subf %279, %280 : vector<2x1xf32>
    %282 = vector.broadcast %274 : vector<2x1xf32> to vector<2x32xf32>
    %283 = arith.subf %268, %282 : vector<2x32xf32>
    %cst_128 = arith.constant 9.99999974E-6 : f32
    %284 = vector.broadcast %cst_128 : f32 to vector<2x1xf32>
    %285 = arith.addf %281, %284 : vector<2x1xf32>
    %286 = math.rsqrt %285 : vector<2x1xf32>
    %287 = vector.broadcast %286 : vector<2x1xf32> to vector<2x32xf32>
    %288 = arith.mulf %283, %287 : vector<2x32xf32>
    %289 = vector.broadcast %269 : vector<1x32xf32> to vector<2x32xf32>
    %290 = arith.mulf %288, %289 : vector<2x32xf32>
    %291 = vector.broadcast %270 : vector<1x32xf32> to vector<2x32xf32>
    %292 = arith.addf %290, %291 : vector<2x32xf32>
    %c0_129 = arith.constant 0 : index
    %c0_130 = arith.constant 0 : index
    %293 = vector.load %arg5[%c0_129, %c0_130] : memref<2x6xf32, #tpu.memory_space<vmem>>, vector<2x6xf32>
    %c0_131 = arith.constant 0 : index
    %c0_132 = arith.constant 0 : index
    %294 = vector.load %arg8[%c0_131, %c0_132] : memref<184x128xf32, #tpu.memory_space<vmem>>, vector<6x16xf32>
    %cst_133 = arith.constant dense<0.000000e+00> : vector<2x16xf32>
    %295 = tpu.matmul %293, %294, %cst_133 {dimension_numbers = #tpu.dot_dimension_numbers<[1], [0], [0], [1], [0, 0, 1, 1], [], []>} : vector<2x6xf32>, vector<6x16xf32>, vector<2x16xf32> -> vector<2x16xf32>
    %c2_134 = arith.constant 2 : index
    %c0_135 = arith.constant 0 : index
    %296 = vector.load %arg9[%c2_134, %c0_135] : memref<8x128xf32, #tpu.memory_space<vmem>>, vector<1x16xf32>
    %297 = vector.broadcast %296 : vector<1x16xf32> to vector<2x16xf32>
    %298 = arith.addf %295, %297 : vector<2x16xf32>
    %cst_136 = arith.constant 0.000000e+00 : f32
    %299 = vector.broadcast %cst_136 : f32 to vector<2x16xf32>
    %300 = arith.maximumf %298, %299 : vector<2x16xf32>
    %c8 = arith.constant 8 : index
    %c0_137 = arith.constant 0 : index
    %301 = vector.load %arg8[%c8, %c0_137] : memref<184x128xf32, #tpu.memory_space<vmem>>, vector<32x128xf32>
    %cst_138 = arith.constant dense<0.000000e+00> : vector<2x128xf32>
    %302 = tpu.matmul %292, %301, %cst_138 {dimension_numbers = #tpu.dot_dimension_numbers<[1], [0], [0], [1], [0, 0, 1, 1], [], []>} : vector<2x32xf32>, vector<32x128xf32>, vector<2x128xf32> -> vector<2x128xf32>
    %c40 = arith.constant 40 : index
    %c0_139 = arith.constant 0 : index
    %303 = vector.load %arg8[%c40, %c0_139] : memref<184x128xf32, #tpu.memory_space<vmem>>, vector<16x128xf32>
    %cst_140 = arith.constant dense<0.000000e+00> : vector<2x128xf32>
    %304 = tpu.matmul %300, %303, %cst_140 {dimension_numbers = #tpu.dot_dimension_numbers<[1], [0], [0], [1], [0, 0, 1, 1], [], []>} : vector<2x16xf32>, vector<16x128xf32>, vector<2x128xf32> -> vector<2x128xf32>
    %305 = arith.addf %302, %304 : vector<2x128xf32>
    %c3_141 = arith.constant 3 : index
    %c0_142 = arith.constant 0 : index
    %306 = vector.load %arg9[%c3_141, %c0_142] : memref<8x128xf32, #tpu.memory_space<vmem>>, vector<1x128xf32>
    %307 = vector.broadcast %306 : vector<1x128xf32> to vector<2x128xf32>
    %308 = arith.addf %305, %307 : vector<2x128xf32>
    %cst_143 = arith.constant 0.000000e+00 : f32
    %309 = vector.broadcast %cst_143 : f32 to vector<2x128xf32>
    %310 = arith.maximumf %308, %309 : vector<2x128xf32>
    %c56 = arith.constant 56 : index
    %c0_144 = arith.constant 0 : index
    %311 = vector.load %arg8[%c56, %c0_144] : memref<184x128xf32, #tpu.memory_space<vmem>>, vector<128x4xf32>
    %cst_145 = arith.constant dense<0.000000e+00> : vector<2x4xf32>
    %312 = tpu.matmul %310, %311, %cst_145 {dimension_numbers = #tpu.dot_dimension_numbers<[1], [0], [0], [1], [0, 0, 1, 1], [], []>} : vector<2x128xf32>, vector<128x4xf32>, vector<2x4xf32> -> vector<2x4xf32>
    %c4_146 = arith.constant 4 : index
    %c0_147 = arith.constant 0 : index
    %313 = vector.load %arg9[%c4_146, %c0_147] : memref<8x128xf32, #tpu.memory_space<vmem>>, vector<1x4xf32>
    %314 = vector.broadcast %313 : vector<1x4xf32> to vector<2x4xf32>
    %315 = arith.addf %312, %314 : vector<2x4xf32>
    %c0_148 = arith.constant 0 : index
    %c0_149 = arith.constant 0 : index
    %316 = vector.load %arg10[%c0_148, %c0_149] : memref<2x4xf32, #tpu.memory_space<vmem>>, vector<2x4xf32>
    tpu.vector_store %arg10[%c0_148, %c0_149], %315 {strides = array<i32>} : memref<2x4xf32, #tpu.memory_space<vmem>>, vector<2x4xf32>,
    return
  }
  func.func @transform_0(%arg0: i32) -> (i32, i32) {
    %c0_i32 = arith.constant 0 : i32
    %c0_i32_0 = arith.constant 0 : i32
    %c0_i32_1 = arith.constant 0 : i32
    return %c0_i32, %c0_i32_0 : i32, i32
  }
  func.func @transform_1(%arg0: i32) -> (i32, i32) {
    %c0_i32 = arith.constant 0 : i32
    %c0_i32_0 = arith.constant 0 : i32
    %c0_i32_1 = arith.constant 0 : i32
    return %c0_i32, %c0_i32_0 : i32, i32
  }
  func.func @transform_2(%arg0: i32) -> (i32, i32) {
    %c0_i32 = arith.constant 0 : i32
    %c0_i32_0 = arith.constant 0 : i32
    %c0_i32_1 = arith.constant 0 : i32
    return %c0_i32, %c0_i32_0 : i32, i32
  }
  func.func @transform_3(%arg0: i32) -> (i32, i32) {
    %c0_i32 = arith.constant 0 : i32
    %c0_i32_0 = arith.constant 0 : i32
    %c0_i32_1 = arith.constant 0 : i32
    return %c0_i32, %c0_i32_0 : i32, i32
  }
  func.func @transform_4(%arg0: i32) -> (i32, i32) {
    %c0_i32 = arith.constant 0 : i32
    %c0_i32_0 = arith.constant 0 : i32
    %c0_i32_1 = arith.constant 0 : i32
    return %c0_i32, %c0_i32_0 : i32, i32
  }
  func.func @transform_5(%arg0: i32) -> (i32, i32, i32) {
    %c0_i32 = arith.constant 0 : i32
    %c0_i32_0 = arith.constant 0 : i32
    %c0_i32_1 = arith.constant 0 : i32
    %c0_i32_2 = arith.constant 0 : i32
    return %c0_i32, %c0_i32_0, %c0_i32_1 : i32, i32, i32
  }
  func.func @transform_6(%arg0: i32) -> (i32, i32, i32) {
    %c0_i32 = arith.constant 0 : i32
    %c0_i32_0 = arith.constant 0 : i32
    %c0_i32_1 = arith.constant 0 : i32
    %c0_i32_2 = arith.constant 0 : i32
    return %c0_i32, %c0_i32_0, %c0_i32_1 : i32, i32, i32
  }
  func.func @transform_7(%arg0: i32) -> (i32, i32) {
    %c0_i32 = arith.constant 0 : i32
    %c0_i32_0 = arith.constant 0 : i32
    %c0_i32_1 = arith.constant 0 : i32
    return %c0_i32, %c0_i32_0 : i32, i32
  }
  func.func @transform_8(%arg0: i32) -> (i32, i32) {
    %c0_i32 = arith.constant 0 : i32
    %c0_i32_0 = arith.constant 0 : i32
    %c0_i32_1 = arith.constant 0 : i32
    return %c0_i32, %c0_i32_0 : i32, i32
  }
  func.func @transform_9(%arg0: i32) -> (i32, i32) {
    %c0_i32 = arith.constant 0 : i32
    %c0_i32_0 = arith.constant 0 : i32
    %c0_i32_1 = arith.constant 0 : i32
    return %c0_i32, %c0_i32_0 : i32, i32
  }
}

</mosaic_0001>

<llo_original>
// kernel: tpu_custom_call.1
$region0: #{tpu_custom_call.1}
  #allocation0 [shape = 'u32[]', space=smem, size = 0x4, offset = 0x4, fixed_abs, tag = 'smem constant byte address 0x4 - core index']
  #allocation1 [shape = 'u32[72,128]{1,0:T(1,128)}', space=vmem, size = 0x9000, scoped, tag = 'internal scratch']
  %s0 = inlined_call_operand.hbm [shape: f32[16,16], index: 0, kind: input, shape index: {}]
  %s1 = inlined_call_operand.hbm [shape: f32[1,16], index: 1, kind: input, shape index: {}]
  %s2 = inlined_call_operand.hbm [shape: f32[2,16], index: 2, kind: input, shape index: {}]
  %s3 = inlined_call_operand.hbm [shape: f32[16,32], index: 3, kind: input, shape index: {}]
  %s4 = inlined_call_operand.vmem [shape: f32[2,6], index: 4, kind: input, shape index: {}]
  %s5 = inlined_call_operand.hbm [shape: f32[2,192,128], index: 5, kind: input, shape index: {}]
  %s6 = inlined_call_operand.hbm [shape: f32[2,8,128], index: 6, kind: input, shape index: {}]
  %s7 = inlined_call_operand.hbm [shape: f32[184,128], index: 7, kind: input, shape index: {}]
  %s8 = inlined_call_operand.hbm [shape: f32[8,128], index: 8, kind: input, shape index: {}]
  %s9 = inlined_call_operand.hbm [shape: f32[2,4], index: 9, kind: output, shape index: {}]
  %s10 = sld [smem:[#allocation0]]
  $region78: #{tpu_custom_call.1} parent=0
    _
  %s12 = ssub.s32 1, %s10
  %s13 = scalar_select 0, %s12, %s10
  $region1: #{tpu_custom_call.1} parent=0
    #allocation2 [shape = 'u8[8192]{0}', space=vmem, size = 0x2000, scoped, tag = 'input window, operand 0, single buffered']
    #allocation3 [shape = 's32[1]{0}', space=sflag, size = 0x4, scoped, tag = 'scoped memory for tpu_custom_call.1']
    #allocation4 [shape = 's32[1]{0}', space=sflag, size = 0x4, scoped, tag = 'scoped memory for tpu_custom_call.1']
    #allocation5 [shape = 'u8[512]{0}', space=vmem, size = 0x400, scoped, tag = 'input window, operand 1, single buffered']
    #allocation6 [shape = 's32[1]{0}', space=sflag, size = 0x4, scoped, tag = 'scoped memory for tpu_custom_call.1']
    #allocation7 [shape = 'u8[1024]{0}', space=vmem, size = 0x400, scoped, tag = 'input window, operand 2, single buffered']
    #allocation8 [shape = 'u8[8192]{0}', space=vmem, size = 0x2000, scoped, tag = 'input window, operand 3, single buffered']
    #allocation9 [shape = 's32[1]{0}', space=sflag, size = 0x4, scoped, tag = 'scoped memory for tpu_custom_call.1']
    #allocation10 [shape = 'u8[196608]{0}', space=vmem, size = 0x30000, scoped, tag = 'input window, operand 5, single buffered']
    #allocation11 [shape = 'u8[8192]{0}', space=vmem, size = 0x2000, scoped, tag = 'input window, operand 6, single buffered']
    #allocation12 [shape = 's32[1]{0}', space=sflag, size = 0x4, scoped, tag = 'scoped memory for tpu_custom_call.1']
    #allocation13 [shape = 'u8[94208]{0}', space=vmem, size = 0x17000, scoped, tag = 'input window, operand 7, single buffered']
    #allocation14 [shape = 'u8[4096]{0}', space=vmem, size = 0x1000, scoped, tag = 'input window, operand 8, single buffered']
    #allocation15 [shape = 's32[1]{0}', space=sflag, size = 0x4, scoped, tag = 'scoped memory for tpu_custom_call.1']
    #allocation16 [shape = 'u8[1024]{0}', space=vmem, size = 0x400, scoped, tag = 'output window, operand 0, single buffered']
    %14 = vsyncpa [#allocation3], 0
    %15 = vsyncpa [#allocation6], 0
    %16 = vsyncpa [#allocation9], 0
    %17 = vsyncpa [#allocation12], 0
    %18 = vsyncpa [#allocation15], 0
    %19 = vsyncpa [#allocation4], 0
    // Predicated region
    $region2: #{tpu_custom_call.1} parent=1 // pred_check
      _
    $region3: #{tpu_custom_call.1} parent=1 // pred_check_branch
      %21 = sbr.rel (0) target = $region5
    $region4: #{tpu_custom_call.1} parent=1 // pred_region
      %23 = vsyncadd [#allocation3], 0
      %s24 = sshll.u32 %s0, 4
      %s25 = int_to_ptr.hbm [resolvable:$true] %s24
      %s26 = sshll.u32 [#allocation2], 4
      %s27 = int_to_ptr.vmem [resolvable:$true] %s26
      %32 = dma.hbm_to_vmem [thread:$0]  %s25, 256, %s27, [#allocation3], 128, 128, 8
    $region5: #{tpu_custom_call.1} parent=1 // pred_fallthru
      _
    // Predicated region
    $region6: #{tpu_custom_call.1} parent=1 // pred_check
      _
    $region7: #{tpu_custom_call.1} parent=1 // pred_check_branch
      %34 = sbr.rel (0) target = $region9
    $region8: #{tpu_custom_call.1} parent=1 // pred_region
      %36 = vsyncadd [#allocation6], 0
      %s38 = sshll.u32 %s1, 4
      %s39 = int_to_ptr.hbm [resolvable:$true] %s38
      %s40 = sshll.u32 [#allocation5], 4
      %s41 = int_to_ptr.vmem [resolvable:$true] %s40
      %43 = dma.hbm_to_vmem [thread:$0]  %s39, 16, %s41, [#allocation6]
    $region9: #{tpu_custom_call.1} parent=1 // pred_fallthru
      _
    // Predicated region
    $region10: #{tpu_custom_call.1} parent=1 // pred_check
      _
    $region11: #{tpu_custom_call.1} parent=1 // pred_check_branch
      %45 = sbr.rel (0) target = $region13
    $region12: #{tpu_custom_call.1} parent=1 // pred_region
      %47 = vsyncadd [#allocation6], 0
      %s49 = sshll.u32 %s2, 4
      %s50 = int_to_ptr.hbm [resolvable:$true] %s49
      %s51 = sshll.u32 [#allocation7], 4
      %s52 = int_to_ptr.vmem [resolvable:$true] %s51
      %54 = dma.hbm_to_vmem [thread:$0]  %s50, 32, %s52, [#allocation6]
    $region13: #{tpu_custom_call.1} parent=1 // pred_fallthru
      _
    // Predicated region
    $region14: #{tpu_custom_call.1} parent=1 // pred_check
      _
    $region15: #{tpu_custom_call.1} parent=1 // pred_check_branch
      %56 = sbr.rel (0) target = $region17
    $region16: #{tpu_custom_call.1} parent=1 // pred_region
      %58 = vsyncadd [#allocation9], 0
      %s59 = sshll.u32 %s3, 4
      %s60 = int_to_ptr.hbm [resolvable:$true] %s59
      %s61 = sshll.u32 [#allocation8], 4
      %s62 = int_to_ptr.vmem [resolvable:$true] %s61
      %67 = dma.hbm_to_vmem [thread:$0]  %s60, 256, %s62, [#allocation9], 128, 128, 8
    $region17: #{tpu_custom_call.1} parent=1 // pred_fallthru
      _
    // Predicated region
    $region18: #{tpu_custom_call.1} parent=1 // pred_check
      _
    $region19: #{tpu_custom_call.1} parent=1 // pred_check_branch
      %69 = sbr.rel (0) target = $region21
    $region20: #{tpu_custom_call.1} parent=1 // pred_region
      _
    $region21: #{tpu_custom_call.1} parent=1 // pred_fallthru
      _
    // Predicated region
    $region22: #{tpu_custom_call.1} parent=1 // pred_check
      _
    $region23: #{tpu_custom_call.1} parent=1 // pred_check_branch
      %71 = sbr.rel (0) target = $region25
    $region24: #{tpu_custom_call.1} parent=1 // pred_region
      %73 = vsyncadd [#allocation9], 0
      %s74 = sshll.u32 %s5, 4
      %s75 = int_to_ptr.hbm [resolvable:$true] %s74
      %s76 = sshll.u32 [#allocation10], 4
      %s77 = int_to_ptr.vmem [resolvable:$true] %s76
      %82 = dma.hbm_to_vmem [thread:$0]  %s75, 6144, %s77, [#allocation9], 128, 128, 8
    $region25: #{tpu_custom_call.1} parent=1 // pred_fallthru
      _
    // Predicated region
    $region26: #{tpu_custom_call.1} parent=1 // pred_check
      _
    $region27: #{tpu_custom_call.1} parent=1 // pred_check_branch
      %84 = sbr.rel (0) target = $region29
    $region28: #{tpu_custom_call.1} parent=1 // pred_region
      %86 = vsyncadd [#allocation12], 0
      %s87 = sshll.u32 %s6, 4
      %s88 = int_to_ptr.hbm [resolvable:$true] %s87
      %s89 = sshll.u32 [#allocation11], 4
      %s90 = int_to_ptr.vmem [resolvable:$true] %s89
      %95 = dma.hbm_to_vmem [thread:$0]  %s88, 256, %s90, [#allocation12], 128, 128, 8
    $region29: #{tpu_custom_call.1} parent=1 // pred_fallthru
      _
    // Predicated region
    $region30: #{tpu_custom_call.1} parent=1 // pred_check
      _
    $region31: #{tpu_custom_call.1} parent=1 // pred_check_branch
      %97 = sbr.rel (0) target = $region33
    $region32: #{tpu_custom_call.1} parent=1 // pred_region
      %99 = vsyncadd [#allocation12], 0
      %s100 = sshll.u32 %s7, 4
      %s101 = int_to_ptr.hbm [resolvable:$true] %s100
      %s102 = sshll.u32 [#allocation13], 4
      %s103 = int_to_ptr.vmem [resolvable:$true] %s102
      %108 = dma.hbm_to_vmem [thread:$0]  %s101, 2944, %s103, [#allocation12], 128, 128, 8
    $region33: #{tpu_custom_call.1} parent=1 // pred_fallthru
      _
    // Predicated region
    $region34: #{tpu_custom_call.1} parent=1 // pred_check
      _
    $region35: #{tpu_custom_call.1} parent=1 // pred_check_branch
      %110 = sbr.rel (0) target = $region37
    $region36: #{tpu_custom_call.1} parent=1 // pred_region
      %112 = vsyncadd [#allocation15], 0
      %s114 = sshll.u32 %s8, 4
      %s115 = int_to_ptr.hbm [resolvable:$true] %s114
      %s116 = sshll.u32 [#allocation14], 4
      %s117 = int_to_ptr.vmem [resolvable:$true] %s116
      %119 = dma.hbm_to_vmem [thread:$0]  %s115, 128, %s117, [#allocation15]
    $region37: #{tpu_custom_call.1} parent=1 // pred_fallthru
      _
    // Predicated region
    $region38: #{tpu_custom_call.1} parent=1 // pred_check
      _
    $region39: #{tpu_custom_call.1} parent=1 // pred_check_branch
      %121 = sbr.rel (0) target = $region41
    $region40: #{tpu_custom_call.1} parent=1 // pred_region
      %123 = dma.done [#allocation3], 256
    $region41: #{tpu_custom_call.1} parent=1 // pred_fallthru
      _
    // Predicated region
    $region42: #{tpu_custom_call.1} parent=1 // pred_check
      _
    $region43: #{tpu_custom_call.1} parent=1 // pred_check_branch
      %125 = sbr.rel (0) target = $region45
    $region44: #{tpu_custom_call.1} parent=1 // pred_region
      %127 = dma.done [#allocation6], 16
    $region45: #{tpu_custom_call.1} parent=1 // pred_fallthru
      _
    // Predicated region
    $region46: #{tpu_custom_call.1} parent=1 // pred_check
      _
    $region47: #{tpu_custom_call.1} parent=1 // pred_check_branch
      %129 = sbr.rel (0) target = $region49
    $region48: #{tpu_custom_call.1} parent=1 // pred_region
      %131 = dma.done [#allocation6], 32
    $region49: #{tpu_custom_call.1} parent=1 // pred_fallthru
      _
    // Predicated region
    $region50: #{tpu_custom_call.1} parent=1 // pred_check
      _
    $region51: #{tpu_custom_call.1} parent=1 // pred_check_branch
      %133 = sbr.rel (0) target = $region53
    $region52: #{tpu_custom_call.1} parent=1 // pred_region
      %135 = dma.done [#allocation9], 256
    $region53: #{tpu_custom_call.1} parent=1 // pred_fallthru
      _
    // Predicated region
    $region54: #{tpu_custom_call.1} parent=1 // pred_check
      _
    $region55: #{tpu_custom_call.1} parent=1 // pred_check_branch
      %137 = sbr.rel (0) target = $region57
    $region56: #{tpu_custom_call.1} parent=1 // pred_region
      %139 = dma.done [#allocation9], 6144
    $region57: #{tpu_custom_call.1} parent=1 // pred_fallthru
      _
    // Predicated region
    $region58: #{tpu_custom_call.1} parent=1 // pred_check
      _
    $region59: #{tpu_custom_call.1} parent=1 // pred_check_branch
      %141 = sbr.rel (0) target = $region61
    $region60: #{tpu_custom_call.1} parent=1 // pred_region
      %143 = dma.done [#allocation12], 256
    $region61: #{tpu_custom_call.1} parent=1 // pred_fallthru
      _
    // Predicated region
    $region62: #{tpu_custom_call.1} parent=1 // pred_check
      _
    $region63: #{tpu_custom_call.1} parent=1 // pred_check_branch
      %145 = sbr.rel (0) target = $region65
    $region64: #{tpu_custom_call.1} parent=1 // pred_region
      %147 = dma.done [#allocation12], 2944
    $region65: #{tpu_custom_call.1} parent=1 // pred_fallthru
      _
    // Predicated region
    $region66: #{tpu_custom_call.1} parent=1 // pred_check
      _
    $region67: #{tpu_custom_call.1} parent=1 // pred_check_branch
      %149 = sbr.rel (0) target = $region69
    $region68: #{tpu_custom_call.1} parent=1 // pred_region
      %151 = dma.done [#allocation15], 128
    $region69: #{tpu_custom_call.1} parent=1 // pred_fallthru
      _
    %v152 = vld [vmem:[#allocation8] sm:$0xff]
    %v153 = vld [vmem:[#allocation8 + $0x8] sm:$0xff]
    %v154 = vld [vmem:[#allocation2] sm:$0xff]
    %v155 = vld [vmem:[#allocation2 + $0x8] sm:$0xff]
    %v156 = vld [vmem:[#allocation5] sm:$0x1]
    %v158 = vperm.slane %v156, 0
    %v160 = vmul.f32 %v154, %v158
    %v161 = vmul.f32 %v155, %v158
    %v162 = vsub.f32 %v160, 1.0
    %v163 = vsub.f32 %v161, 1.0
    %v164 = vmul.f32 %v162, 1e+09
    %v165 = vmul.f32 %v163, 1e+09
    %v166 = vld [vmem:[#allocation11] sm:$0x1]
    %v167 = vld [vmem:[#allocation11 + $0x1] sm:$0x1]
    %v168 = vld [vmem:[#allocation11 + $0x2] sm:$0x1]
    %v169 = vld [vmem:[#allocation11 + $0x3] sm:$0x1]
    %v170 = vld [vmem:[#allocation11 + $0x4] sm:$0x1]
    %v171 = vld [vmem:[#allocation11 + $0x5] sm:$0x1]
    %v172 = vld [vmem:[#allocation11 + $0x6] sm:$0x1]
    %v173 = vld [vmem:[#allocation11 + $0x7] sm:$0x1]
    %vm174 = vcmask 261120
    %v175 = vsel %vm174, %v152, 0.0
    %176 = vadd.xlane.f32.xlu0 %v175
    %v177 = vpop.xlane.xlu0 %176
    %v178 = vsel %vm174, %v153, 0.0
    %179 = vadd.xlane.f32.xlu0 %v178
    %v180 = vpop.xlane.xlu0 %179
    %v181 = vrcp.pop 32.0
    %v182 = vmul.f32 32.0, %v181
    %v183 = vsub.f32 1.0, %v182
    %v184 = vmul.f32 %v181, %v183
    %v185 = vadd.f32 %v181, %v184
    %vm186 = vweird.f32 %v181
    %v187 = vsel %vm186, %v181, %v185
    %v188 = vmul.f32 %v177, %v187
    %v189 = vmul.f32 %v180, %v187
    %v190 = vmul.f32 %v152, %v152
    %v191 = vmul.f32 %v153, %v153
    %v192 = vsel %vm174, %v190, 0.0
    %193 = vadd.xlane.f32.xlu0 %v192
    %v194 = vpop.xlane.xlu0 %193
    %v195 = vsel %vm174, %v191, 0.0
    %196 = vadd.xlane.f32.xlu0 %v195
    %v197 = vpop.xlane.xlu0 %196
    %v198 = vmul.f32 %v194, %v187
    %v199 = vmul.f32 %v197, %v187
    %v200 = vmul.f32 %v188, %v188
    %v201 = vmul.f32 %v189, %v189
    %v202 = vsub.f32 %v198, %v200
    %v203 = vsub.f32 %v199, %v201
    %v204 = vsub.f32 %v152, %v188
    %v205 = vsub.f32 %v153, %v189
    %v206 = vadd.f32 %v202, 1e-05
    %v207 = vadd.f32 %v203, 1e-05
    %v208 = vrsqrt.pop %v206
    %v209 = vmul.f32 %v208, %v206
    %v210 = vmul.f32 %v209, %v208
    %v211 = vmul.f32 0.5, %v210
    %v212 = vsub.f32 1.5, %v211
    %v213 = vmul.f32 %v208, %v212
    %vm214 = vweird.f32 %v206
    %vm215 = vweird.f32 %v208
    %vm216 = vmor %vm214, %vm215
    %v217 = vsel %vm216, %v208, %v213
    %v218 = vrsqrt.pop %v207
    %v219 = vmul.f32 %v218, %v207
    %v220 = vmul.f32 %v219, %v218
    %v221 = vmul.f32 0.5, %v220
    %v222 = vsub.f32 1.5, %v221
    %v223 = vmul.f32 %v218, %v222
    %vm224 = vweird.f32 %v207
    %vm225 = vweird.f32 %v218
    %vm226 = vmor %vm224, %vm225
    %v227 = vsel %vm226, %v218, %v223
    %v228 = vmul.f32 %v204, %v217
    %v229 = vmul.f32 %v205, %v227
    %v230 = vperm.slane %v166, 0
    %v231 = vmul.f32 %v228, %v230
    %v232 = vmul.f32 %v229, %v230
    %v233 = vperm.slane %v167, 0
    %v234 = vadd.f32 %v231, %v233
    %v235 = vadd.f32 %v232, %v233
    %v236 = vld [vmem:[#allocation10] sm:$0xff]
    %v237 = vld [vmem:[#allocation10 + $0x8] sm:$0xff]
    %v238 = vld [vmem:[#allocation10 + $0x10] sm:$0xff]
    %v239 = vld [vmem:[#allocation10 + $0x18] sm:$0xff]
    %v240 = vperm.slane %v170, 0
    %v242 = vsel %vm174, %v234, 0
    %v245 = vsel %vm174, %v235, 0
    %247 = vmatpush.msra.mxu0 0.0
    %248 = vmatpush.msra.mxu0 0.0
    %249 = vmatpush.msra.mxu0 0.0
    %250 = vmatpush.msra.mxu0 0.0
    %251 = vmatpush.msra.mxu0 0.0
    %252 = vmatpush.msra.mxu0 0.0
    %253 = vmatpush.msra.mxu0 0.0
    %254 = vmatpush.msra.mxu0 0.0
    %255 = vmatpush.msra.mxu0 0.0
    %256 = vmatpush.msra.mxu0 0.0
    %257 = vmatpush.msra.mxu0 0.0
    %258 = vmatpush.msra.mxu0 0.0
    %259 = vmatpush.msra.mxu0 %v239
    %260 = vmatpush.msra.mxu0 %v238
    %261 = vmatpush.msra.mxu0 %v237
    %262 = vmatpush.msra.mxu0 %v236
    %263 = vmatmul.f32.gmra.mxu0 %v242
    %v264 = vpop.f32.mrf.mxu0
    %v265 = vadd.f32 %v240, %v264
    %266 = vmatmul.f32.gmra.mxu0 %v245
    %v267 = vpop.f32.mrf.mxu0
    %v268 = vadd.f32 %v240, %v267
    %269 = vdwg.mxu0
    %272 = vrot.lane.b32.xlu0 %v265, 96
    %v273 = vpop.permute.xlu0 %272
    %274 = vrot.lane.b32.xlu0 %v268, 96
    %v275 = vpop.permute.xlu0 %274
    %vm276 = vcmask 130048
    %v277 = vsel %vm276, %v265, 0
    %v279 = vsel %vm276, %v268, 0
    %v281 = vsel %vm276, %v273, 0
    %v283 = vsel %vm276, %v275, 0
    %285 = vmatpush.xpose.msra.mxu0 0.0
    %286 = vmatpush.xpose.msra.mxu0 0.0
    %287 = vmatpush.xpose.msra.mxu0 0.0
    %288 = vmatpush.xpose.msra.mxu0 0.0
    %289 = vmatpush.xpose.msra.mxu0 0.0
    %290 = vmatpush.xpose.msra.mxu0 0.0
    %291 = vmatpush.xpose.msra.mxu0 0.0
    %292 = vmatpush.xpose.msra.mxu0 0.0
    %293 = vmatpush.xpose.msra.mxu0 0.0
    %294 = vmatpush.xpose.msra.mxu0 0.0
    %295 = vmatpush.xpose.msra.mxu0 0.0
    %296 = vmatpush.xpose.msra.mxu0 0.0
    %297 = vmatpush.xpose.msra.mxu0 0.0
    %298 = vmatpush.xpose.msra.mxu0 0.0
    %299 = vmatpush.xpose.msra.mxu0 %v283
    %300 = vmatpush.xpose.msra.mxu0 %v281
    %301 = vmatmul.f32.gmra.mxu0 %v277
    %v302 = vpop.f32.mrf.mxu0
    %v303 = vadd.f32 0.0, %v302
    %304 = vmatmul.f32.gmra.mxu0 %v279
    %v305 = vpop.f32.mrf.mxu0
    %v306 = vadd.f32 0.0, %v305
    %307 = vdwg.mxu0
    %v308 = vmul.f32 %v303, 0.25
    %v309 = vmul.f32 %v306, 0.25
    %v310 = vadd.f32 %v308, %v164
    %v311 = vadd.f32 %v309, %v165
    %v312 = vsel %vm276, %v310, -inf
    %313 = vmax.xlane.f32.xlu0 %v312
    %v314 = vpop.xlane.xlu0 %313
    %v315 = vsel %vm276, %v311, -inf
    %316 = vmax.xlane.f32.xlu0 %v315
    %v317 = vpop.xlane.xlu0 %316
    %v318 = vsub.f32 %v310, %v314
    %v319 = vsub.f32 %v311, %v317
    %v320 = vmul.f32 %v318, 1.442695
    %v321 = vpow.pop %v320
    %v322 = vmul.f32 %v319, 1.442695
    %v323 = vpow.pop %v322
    %v324 = vsel %vm276, %v321, 0.0
    %325 = vadd.xlane.f32.xlu0 %v324
    %v326 = vpop.xlane.xlu0 %325
    %v327 = vsel %vm276, %v323, 0.0
    %328 = vadd.xlane.f32.xlu0 %v327
    %v329 = vpop.xlane.xlu0 %328
    %v330 = vrcp.pop %v326
    %v331 = vrcp.pop %v329
    %v332 = vmul.f32 %v321, %v330
    %v333 = vmul.f32 %v323, %v331
    %334 = vrot.lane.b32.xlu0 %v265, 64
    %v335 = vpop.permute.xlu0 %334
    %336 = vrot.lane.b32.xlu0 %v268, 64
    %v337 = vpop.permute.xlu0 %336
    %v341 = vsel %vm276, %v332, 0
    %v344 = vsel %vm276, %v333, 0
    %346 = vmatpush.msra.mxu0 0.0
    %347 = vmatpush.msra.mxu0 0.0
    %348 = vmatpush.msra.mxu0 0.0
    %349 = vmatpush.msra.mxu0 0.0
    %350 = vmatpush.msra.mxu0 0.0
    %351 = vmatpush.msra.mxu0 0.0
    %352 = vmatpush.msra.mxu0 0.0
    %353 = vmatpush.msra.mxu0 0.0
    %354 = vmatpush.msra.mxu0 0.0
    %355 = vmatpush.msra.mxu0 0.0
    %356 = vmatpush.msra.mxu0 0.0
    %357 = vmatpush.msra.mxu0 0.0
    %358 = vmatpush.msra.mxu0 0.0
    %359 = vmatpush.msra.mxu0 0.0
    %360 = vmatpush.msra.mxu0 %v337
    %361 = vmatpush.msra.mxu0 %v335
    %362 = vmatmul.f32.gmra.mxu0 %v341
    %v363 = vpop.f32.mrf.mxu0
    %v364 = vadd.f32 0.0, %v363
    %365 = vmatmul.f32.gmra.mxu0 %v344
    %v366 = vpop.f32.mrf.mxu0
    %v367 = vadd.f32 0.0, %v366
    %368 = vdwg.mxu0
    %v369 = vperm.slane %v173, 0
    %v370 = vadd.f32 %v369, %v364
    %v371 = vadd.f32 %v369, %v367
    %372 = vrot.lane.b32.xlu0 %v265, 112
    %v373 = vpop.permute.xlu0 %372
    %374 = vrot.lane.b32.xlu0 %v268, 112
    %v375 = vpop.permute.xlu0 %374
    %376 = vrot.lane.b32.xlu0 %v265, 80
    %v377 = vpop.permute.xlu0 %376
    %378 = vrot.lane.b32.xlu0 %v268, 80
    %v379 = vpop.permute.xlu0 %378
    %v380 = vsel %vm276, %v373, 0
    %v382 = vsel %vm276, %v375, 0
    %v384 = vsel %vm276, %v377, 0
    %v386 = vsel %vm276, %v379, 0
    %388 = vmatpush.xpose.msra.mxu0 0.0
    %389 = vmatpush.xpose.msra.mxu0 0.0
    %390 = vmatpush.xpose.msra.mxu0 0.0
    %391 = vmatpush.xpose.msra.mxu0 0.0
    %392 = vmatpush.xpose.msra.mxu0 0.0
    %393 = vmatpush.xpose.msra.mxu0 0.0
    %394 = vmatpush.xpose.msra.mxu0 0.0
    %395 = vmatpush.xpose.msra.mxu0 0.0
    %396 = vmatpush.xpose.msra.mxu0 0.0
    %397 = vmatpush.xpose.msra.mxu0 0.0
    %398 = vmatpush.xpose.msra.mxu0 0.0
    %399 = vmatpush.xpose.msra.mxu0 0.0
    %400 = vmatpush.xpose.msra.mxu0 0.0
    %401 = vmatpush.xpose.msra.mxu0 0.0
    %402 = vmatpush.xpose.msra.mxu0 %v386
    %403 = vmatpush.xpose.msra.mxu0 %v384
    %404 = vmatmul.f32.gmra.mxu0 %v380
    %v405 = vpop.f32.mrf.mxu0
    %v406 = vadd.f32 0.0, %v405
    %407 = vmatmul.f32.gmra.mxu0 %v382
    %v408 = vpop.f32.mrf.mxu0
    %v409 = vadd.f32 0.0, %v408
    %410 = vdwg.mxu0
    %v411 = vmul.f32 %v406, 0.25
    %v412 = vmul.f32 %v409, 0.25
    %v413 = vadd.f32 %v411, %v164
    %v414 = vadd.f32 %v412, %v165
    %v415 = vsel %vm276, %v413, -inf
    %416 = vmax.xlane.f32.xlu0 %v415
    %v417 = vpop.xlane.xlu0 %416
    %v418 = vsel %vm276, %v414, -inf
    %419 = vmax.xlane.f32.xlu0 %v418
    %v420 = vpop.xlane.xlu0 %419
    %v421 = vsub.f32 %v413, %v417
    %v422 = vsub.f32 %v414, %v420
    %v423 = vmul.f32 %v421, 1.442695
    %v424 = vpow.pop %v423
    %v425 = vmul.f32 %v422, 1.442695
    %v426 = vpow.pop %v425
    %v427 = vsel %vm276, %v424, 0.0
    %428 = vadd.xlane.f32.xlu0 %v427
    %v429 = vpop.xlane.xlu0 %428
    %v430 = vsel %vm276, %v426, 0.0
    %431 = vadd.xlane.f32.xlu0 %v430
    %v432 = vpop.xlane.xlu0 %431
    %v433 = vrcp.pop %v429
    %v434 = vrcp.pop %v432
    %v435 = vmul.f32 %v424, %v433
    %v436 = vmul.f32 %v426, %v434
    %437 = vrot.lane.b32.xlu0 %v265, 32
    %v438 = vpop.permute.xlu0 %437
    %439 = vrot.lane.b32.xlu0 %v268, 32
    %v440 = vpop.permute.xlu0 %439
    %v444 = vsel %vm276, %v435, 0
    %v447 = vsel %vm276, %v436, 0
    %449 = vmatpush.msra.mxu0 0.0
    %450 = vmatpush.msra.mxu0 0.0
    %451 = vmatpush.msra.mxu0 0.0
    %452 = vmatpush.msra.mxu0 0.0
    %453 = vmatpush.msra.mxu0 0.0
    %454 = vmatpush.msra.mxu0 0.0
    %455 = vmatpush.msra.mxu0 0.0
    %456 = vmatpush.msra.mxu0 0.0
    %457 = vmatpush.msra.mxu0 0.0
    %458 = vmatpush.msra.mxu0 0.0
    %459 = vmatpush.msra.mxu0 0.0
    %460 = vmatpush.msra.mxu0 0.0
    %461 = vmatpush.msra.mxu0 0.0
    %462 = vmatpush.msra.mxu0 0.0
    %463 = vmatpush.msra.mxu0 %v440
    %464 = vmatpush.msra.mxu0 %v438
    %465 = vmatmul.f32.gmra.mxu0 %v444
    %v466 = vpop.f32.mrf.mxu0
    %v467 = vadd.f32 0.0, %v466
    %468 = vmatmul.f32.gmra.mxu0 %v447
    %v469 = vpop.f32.mrf.mxu0
    %v470 = vadd.f32 0.0, %v469
    %471 = vdwg.mxu0
    %v472 = vadd.f32 %v370, %v467
    %v473 = vadd.f32 %v371, %v470
    %v474 = vadd.f32 %v152, %v472
    %v475 = vadd.f32 %v153, %v473
    %v476 = vsel %vm174, %v474, 0.0
    %477 = vadd.xlane.f32.xlu0 %v476
    %v478 = vpop.xlane.xlu0 %477
    %v479 = vsel %vm174, %v475, 0.0
    %480 = vadd.xlane.f32.xlu0 %v479
    %v481 = vpop.xlane.xlu0 %480
    %v482 = vmul.f32 %v478, %v187
    %v483 = vmul.f32 %v481, %v187
    %v484 = vmul.f32 %v474, %v474
    %v485 = vmul.f32 %v475, %v475
    %v486 = vsel %vm174, %v484, 0.0
    %487 = vadd.xlane.f32.xlu0 %v486
    %v488 = vpop.xlane.xlu0 %487
    %v489 = vsel %vm174, %v485, 0.0
    %490 = vadd.xlane.f32.xlu0 %v489
    %v491 = vpop.xlane.xlu0 %490
    %v492 = vmul.f32 %v488, %v187
    %v493 = vmul.f32 %v491, %v187
    %v494 = vmul.f32 %v482, %v482
    %v495 = vmul.f32 %v483, %v483
    %v496 = vsub.f32 %v492, %v494
    %v497 = vsub.f32 %v493, %v495
    %v498 = vsub.f32 %v474, %v482
    %v499 = vsub.f32 %v475, %v483
    %v500 = vadd.f32 %v496, 1e-05
    %v501 = vadd.f32 %v497, 1e-05
    %v502 = vrsqrt.pop %v500
    %v503 = vmul.f32 %v502, %v500
    %v504 = vmul.f32 %v503, %v502
    %v505 = vmul.f32 0.5, %v504
    %v506 = vsub.f32 1.5, %v505
    %v507 = vmul.f32 %v502, %v506
    %vm508 = vweird.f32 %v500
    %vm509 = vweird.f32 %v502
    %vm510 = vmor %vm508, %vm509
    %v511 = vsel %vm510, %v502, %v507
    %v512 = vrsqrt.pop %v501
    %v513 = vmul.f32 %v512, %v501
    %v514 = vmul.f32 %v513, %v512
    %v515 = vmul.f32 0.5, %v514
    %v516 = vsub.f32 1.5, %v515
    %v517 = vmul.f32 %v512, %v516
    %vm518 = vweird.f32 %v501
    %vm519 = vweird.f32 %v512
    %vm520 = vmor %vm518, %vm519
    %v521 = vsel %vm520, %v512, %v517
    %v522 = vmul.f32 %v498, %v511
    %v523 = vmul.f32 %v499, %v521
    %v524 = vperm.slane %v168, 0
    %v525 = vmul.f32 %v522, %v524
    %v526 = vmul.f32 %v523, %v524
    %v527 = vperm.slane %v169, 0
    %v528 = vadd.f32 %v525, %v527
    %v529 = vadd.f32 %v526, %v527
    %v530 = vld [vmem:[#allocation10 + $0x20] sm:$0xff]
    %v531 = vld [vmem:[#allocation10 + $0x28] sm:$0xff]
    %v532 = vld [vmem:[#allocation10 + $0x30] sm:$0xff]
    %v533 = vld [vmem:[#allocation10 + $0x38] sm:$0xff]
    %v534 = vperm.slane %v171, 0
    %v536 = vsel %vm174, %v528, 0
    %v539 = vsel %vm174, %v529, 0
    %541 = vmatpush.msra.mxu0 0.0
    %542 = vmatpush.msra.mxu0 0.0
    %543 = vmatpush.msra.mxu0 0.0
    %544 = vmatpush.msra.mxu0 0.0
    %545 = vmatpush.msra.mxu0 0.0
    %546 = vmatpush.msra.mxu0 0.0
    %547 = vmatpush.msra.mxu0 0.0
    %548 = vmatpush.msra.mxu0 0.0
    %549 = vmatpush.msra.mxu0 0.0
    %550 = vmatpush.msra.mxu0 0.0
    %551 = vmatpush.msra.mxu0 0.0
    %552 = vmatpush.msra.mxu0 0.0
    %553 = vmatpush.msra.mxu0 %v533
    %554 = vmatpush.msra.mxu0 %v532
    %555 = vmatpush.msra.mxu0 %v531
    %556 = vmatpush.msra.mxu0 %v530
    %557 = vmatmul.f32.gmra.mxu0 %v536
    %v558 = vpop.f32.mrf.mxu0
    %v559 = vadd.f32 %v534, %v558
    %560 = vmatmul.f32.gmra.mxu0 %v539
    %v561 = vpop.f32.mrf.mxu0
    %v562 = vadd.f32 %v534, %v561
    %563 = vdwg.mxu0
    %v564 = vmul.f32 %v559, 0.5
    %v565 = vmul.f32 %v562, 0.5
    %v566 = vmul.f32 %v559, 0.044715
    %v567 = vmul.f32 %v562, 0.044715
    %v568 = vmul.f32 %v566, %v559
    %v569 = vmul.f32 %v567, %v562
    %v570 = vmul.f32 %v568, %v559
    %v571 = vmul.f32 %v569, %v562
    %v572 = vadd.f32 %v559, %v570
    %v573 = vadd.f32 %v562, %v571
    %v574 = vmul.f32 %v572, 0.7978846
    %v575 = vmul.f32 %v573, 0.7978846
    %v576 = vtanh.pop %v574
    %v577 = vtanh.pop %v575
    %v578 = vadd.f32 %v576, 1.0
    %v579 = vadd.f32 %v577, 1.0
    %v580 = vmul.f32 %v564, %v578
    %v581 = vmul.f32 %v565, %v579
    %v582 = vld [vmem:[#allocation10 + $0x40] sm:$0xff]
    %v583 = vld [vmem:[#allocation10 + $0x48] sm:$0xff]
    %v584 = vld [vmem:[#allocation10 + $0x50] sm:$0xff]
    %v585 = vld [vmem:[#allocation10 + $0x58] sm:$0xff]
    %v586 = vld [vmem:[#allocation10 + $0x60] sm:$0xff]
    %v587 = vld [vmem:[#allocation10 + $0x68] sm:$0xff]
    %v588 = vld [vmem:[#allocation10 + $0x70] sm:$0xff]
    %v589 = vld [vmem:[#allocation10 + $0x78] sm:$0xff]
    %v590 = vld [vmem:[#allocation10 + $0x80] sm:$0xff]
    %v591 = vld [vmem:[#allocation10 + $0x88] sm:$0xff]
    %v592 = vld [vmem:[#allocation10 + $0x90] sm:$0xff]
    %v593 = vld [vmem:[#allocation10 + $0x98] sm:$0xff]
    %v594 = vld [vmem:[#allocation10 + $0xa0] sm:$0xff]
    %v595 = vld [vmem:[#allocation10 + $0xa8] sm:$0xff]
    %v596 = vld [vmem:[#allocation10 + $0xb0] sm:$0xff]
    %v597 = vld [vmem:[#allocation10 + $0xb8] sm:$0xff]
    %598 = vmatpush.msra.mxu0 %v597
    %599 = vmatpush.msra.mxu0 %v596
    %600 = vmatpush.msra.mxu0 %v595
    %601 = vmatpush.msra.mxu0 %v594
    %602 = vmatpush.msra.mxu0 %v593
    %603 = vmatpush.msra.mxu0 %v592
    %604 = vmatpush.msra.mxu0 %v591
    %605 = vmatpush.msra.mxu0 %v590
    %606 = vmatpush.msra.mxu0 %v589
    %607 = vmatpush.msra.mxu0 %v588
    %608 = vmatpush.msra.mxu0 %v587
    %609 = vmatpush.msra.mxu0 %v586
    %610 = vmatpush.msra.mxu0 %v585
    %611 = vmatpush.msra.mxu0 %v584
    %612 = vmatpush.msra.mxu0 %v583
    %613 = vmatpush.msra.mxu0 %v582
    %614 = vmatmul.f32.gmra.mxu0 %v580
    %v615 = vpop.f32.mrf.mxu0
    %v616 = vadd.f32 0.0, %v615
    %617 = vmatmul.f32.gmra.mxu0 %v581
    %v618 = vpop.f32.mrf.mxu0
    %v619 = vadd.f32 0.0, %v618
    %620 = vdwg.mxu0
    %v621 = vadd.f32 %v474, %v616
    %v622 = vadd.f32 %v475, %v619
    %v623 = vperm.slane %v172, 0
    %v624 = vadd.f32 %v621, %v623
    %v625 = vadd.f32 %v622, %v623
    %s626 = scalar_lea.vmem [#allocation11], 8
    %v627 = vld [vmem:[%s626] sm:$0x1]
    %v628 = vld [vmem:[%s626 + $0x1] sm:$0x1]
    %v629 = vld [vmem:[%s626 + $0x2] sm:$0x1]
    %v630 = vld [vmem:[%s626 + $0x3] sm:$0x1]
    %v631 = vld [vmem:[%s626 + $0x4] sm:$0x1]
    %v632 = vld [vmem:[%s626 + $0x5] sm:$0x1]
    %v633 = vld [vmem:[%s626 + $0x6] sm:$0x1]
    %v634 = vld [vmem:[%s626 + $0x7] sm:$0x1]
    %v635 = vsel %vm174, %v624, 0.0
    %636 = vadd.xlane.f32.xlu0 %v635
    %v637 = vpop.xlane.xlu0 %636
    %v638 = vsel %vm174, %v625, 0.0
    %639 = vadd.xlane.f32.xlu0 %v638
    %v640 = vpop.xlane.xlu0 %639
    %v641 = vmul.f32 %v637, %v187
    %v642 = vmul.f32 %v640, %v187
    %v643 = vmul.f32 %v624, %v624
    %v644 = vmul.f32 %v625, %v625
    %v645 = vsel %vm174, %v643, 0.0
    %646 = vadd.xlane.f32.xlu0 %v645
    %v647 = vpop.xlane.xlu0 %646
    %v648 = vsel %vm174, %v644, 0.0
    %649 = vadd.xlane.f32.xlu0 %v648
    %v650 = vpop.xlane.xlu0 %649
    %v651 = vmul.f32 %v647, %v187
    %v652 = vmul.f32 %v650, %v187
    %v653 = vmul.f32 %v641, %v641
    %v654 = vmul.f32 %v642, %v642
    %v655 = vsub.f32 %v651, %v653
    %v656 = vsub.f32 %v652, %v654
    %v657 = vsub.f32 %v624, %v641
    %v658 = vsub.f32 %v625, %v642
    %v659 = vadd.f32 %v655, 1e-05
    %v660 = vadd.f32 %v656, 1e-05
    %v661 = vrsqrt.pop %v659
    %v662 = vmul.f32 %v661, %v659
    %v663 = vmul.f32 %v662, %v661
    %v664 = vmul.f32 0.5, %v663
    %v665 = vsub.f32 1.5, %v664
    %v666 = vmul.f32 %v661, %v665
    %vm667 = vweird.f32 %v659
    %vm668 = vweird.f32 %v661
    %vm669 = vmor %vm667, %vm668
    %v670 = vsel %vm669, %v661, %v666
    %v671 = vrsqrt.pop %v660
    %v672 = vmul.f32 %v671, %v660
    %v673 = vmul.f32 %v672, %v671
    %v674 = vmul.f32 0.5, %v673
    %v675 = vsub.f32 1.5, %v674
    %v676 = vmul.f32 %v671, %v675
    %vm677 = vweird.f32 %v660
    %vm678 = vweird.f32 %v671
    %vm679 = vmor %vm677, %vm678
    %v680 = vsel %vm679, %v671, %v676
    %v681 = vmul.f32 %v657, %v670
    %v682 = vmul.f32 %v658, %v680
    %v683 = vperm.slane %v627, 0
    %v684 = vmul.f32 %v681, %v683
    %v685 = vmul.f32 %v682, %v683
    %v686 = vperm.slane %v628, 0
    %v687 = vadd.f32 %v684, %v686
    %v688 = vadd.f32 %v685, %v686
    %s689 = scalar_lea.vmem [#allocation10], 192
    %v690 = vld [vmem:[%s689] sm:$0xff]
    %v691 = vld [vmem:[%s689 + $0x8] sm:$0xff]
    %v692 = vld [vmem:[%s689 + $0x10] sm:$0xff]
    %v693 = vld [vmem:[%s689 + $0x18] sm:$0xff]
    %v694 = vperm.slane %v631, 0
    %v696 = vsel %vm174, %v687, 0
    %v699 = vsel %vm174, %v688, 0
    %701 = vmatpush.msra.mxu0 0.0
    %702 = vmatpush.msra.mxu0 0.0
    %703 = vmatpush.msra.mxu0 0.0
    %704 = vmatpush.msra.mxu0 0.0
    %705 = vmatpush.msra.mxu0 0.0
    %706 = vmatpush.msra.mxu0 0.0
    %707 = vmatpush.msra.mxu0 0.0
    %708 = vmatpush.msra.mxu0 0.0
    %709 = vmatpush.msra.mxu0 0.0
    %710 = vmatpush.msra.mxu0 0.0
    %711 = vmatpush.msra.mxu0 0.0
    %712 = vmatpush.msra.mxu0 0.0
    %713 = vmatpush.msra.mxu0 %v693
    %714 = vmatpush.msra.mxu0 %v692
    %715 = vmatpush.msra.mxu0 %v691
    %716 = vmatpush.msra.mxu0 %v690
    %717 = vmatmul.f32.gmra.mxu0 %v696
    %v718 = vpop.f32.mrf.mxu0
    %v719 = vadd.f32 %v694, %v718
    %720 = vmatmul.f32.gmra.mxu0 %v699
    %v721 = vpop.f32.mrf.mxu0
    %v722 = vadd.f32 %v694, %v721
    %723 = vdwg.mxu0
    %726 = vrot.lane.b32.xlu0 %v719, 96
    %v727 = vpop.permute.xlu0 %726
    %728 = vrot.lane.b32.xlu0 %v722, 96
    %v729 = vpop.permute.xlu0 %728
    %v730 = vsel %vm276, %v719, 0
    %v732 = vsel %vm276, %v722, 0
    %v734 = vsel %vm276, %v727, 0
    %v736 = vsel %vm276, %v729, 0
    %738 = vmatpush.xpose.msra.mxu0 0.0
    %739 = vmatpush.xpose.msra.mxu0 0.0
    %740 = vmatpush.xpose.msra.mxu0 0.0
    %741 = vmatpush.xpose.msra.mxu0 0.0
    %742 = vmatpush.xpose.msra.mxu0 0.0
    %743 = vmatpush.xpose.msra.mxu0 0.0
    %744 = vmatpush.xpose.msra.mxu0 0.0
    %745 = vmatpush.xpose.msra.mxu0 0.0
    %746 = vmatpush.xpose.msra.mxu0 0.0
    %747 = vmatpush.xpose.msra.mxu0 0.0
    %748 = vmatpush.xpose.msra.mxu0 0.0
    %749 = vmatpush.xpose.msra.mxu0 0.0
    %750 = vmatpush.xpose.msra.mxu0 0.0
    %751 = vmatpush.xpose.msra.mxu0 0.0
    %752 = vmatpush.xpose.msra.mxu0 %v736
    %753 = vmatpush.xpose.msra.mxu0 %v734
    %754 = vmatmul.f32.gmra.mxu0 %v730
    %v755 = vpop.f32.mrf.mxu0
    %v756 = vadd.f32 0.0, %v755
    %757 = vmatmul.f32.gmra.mxu0 %v732
    %v758 = vpop.f32.mrf.mxu0
    %v759 = vadd.f32 0.0, %v758
    %760 = vdwg.mxu0
    %v761 = vmul.f32 %v756, 0.25
    %v762 = vmul.f32 %v759, 0.25
    %v763 = vadd.f32 %v761, %v164
    %v764 = vadd.f32 %v762, %v165
    %v765 = vsel %vm276, %v763, -inf
    %766 = vmax.xlane.f32.xlu0 %v765
    %v767 = vpop.xlane.xlu0 %766
    %v768 = vsel %vm276, %v764, -inf
    %769 = vmax.xlane.f32.xlu0 %v768
    %v770 = vpop.xlane.xlu0 %769
    %v771 = vsub.f32 %v763, %v767
    %v772 = vsub.f32 %v764, %v770
    %v773 = vmul.f32 %v771, 1.442695
    %v774 = vpow.pop %v773
    %v775 = vmul.f32 %v772, 1.442695
    %v776 = vpow.pop %v775
    %v777 = vsel %vm276, %v774, 0.0
    %778 = vadd.xlane.f32.xlu0 %v777
    %v779 = vpop.xlane.xlu0 %778
    %v780 = vsel %vm276, %v776, 0.0
    %781 = vadd.xlane.f32.xlu0 %v780
    %v782 = vpop.xlane.xlu0 %781
    %v783 = vrcp.pop %v779
    %v784 = vrcp.pop %v782
    %v785 = vmul.f32 %v774, %v783
    %v786 = vmul.f32 %v776, %v784
    %787 = vrot.lane.b32.xlu0 %v719, 64
    %v788 = vpop.permute.xlu0 %787
    %789 = vrot.lane.b32.xlu0 %v722, 64
    %v790 = vpop.permute.xlu0 %789
    %v794 = vsel %vm276, %v785, 0
    %v797 = vsel %vm276, %v786, 0
    %799 = vmatpush.msra.mxu0 0.0
    %800 = vmatpush.msra.mxu0 0.0
    %801 = vmatpush.msra.mxu0 0.0
    %802 = vmatpush.msra.mxu0 0.0
    %803 = vmatpush.msra.mxu0 0.0
    %804 = vmatpush.msra.mxu0 0.0
    %805 = vmatpush.msra.mxu0 0.0
    %806 = vmatpush.msra.mxu0 0.0
    %807 = vmatpush.msra.mxu0 0.0
    %808 = vmatpush.msra.mxu0 0.0
    %809 = vmatpush.msra.mxu0 0.0
    %810 = vmatpush.msra.mxu0 0.0
    %811 = vmatpush.msra.mxu0 0.0
    %812 = vmatpush.msra.mxu0 0.0
    %813 = vmatpush.msra.mxu0 %v790
    %814 = vmatpush.msra.mxu0 %v788
    %815 = vmatmul.f32.gmra.mxu0 %v794
    %v816 = vpop.f32.mrf.mxu0
    %v817 = vadd.f32 0.0, %v816
    %818 = vmatmul.f32.gmra.mxu0 %v797
    %v819 = vpop.f32.mrf.mxu0
    %v820 = vadd.f32 0.0, %v819
    %821 = vdwg.mxu0
    %v822 = vperm.slane %v634, 0
    %v823 = vadd.f32 %v822, %v817
    %v824 = vadd.f32 %v822, %v820
    %825 = vrot.lane.b32.xlu0 %v719, 112
    %v826 = vpop.permute.xlu0 %825
    %827 = vrot.lane.b32.xlu0 %v722, 112
    %v828 = vpop.permute.xlu0 %827
    %829 = vrot.lane.b32.xlu0 %v719, 80
    %v830 = vpop.permute.xlu0 %829
    %831 = vrot.lane.b32.xlu0 %v722, 80
    %v832 = vpop.permute.xlu0 %831
    %v833 = vsel %vm276, %v826, 0
    %v835 = vsel %vm276, %v828, 0
    %v837 = vsel %vm276, %v830, 0
    %v839 = vsel %vm276, %v832, 0
    %841 = vmatpush.xpose.msra.mxu0 0.0
    %842 = vmatpush.xpose.msra.mxu0 0.0
    %843 = vmatpush.xpose.msra.mxu0 0.0
    %844 = vmatpush.xpose.msra.mxu0 0.0
    %845 = vmatpush.xpose.msra.mxu0 0.0
    %846 = vmatpush.xpose.msra.mxu0 0.0
    %847 = vmatpush.xpose.msra.mxu0 0.0
    %848 = vmatpush.xpose.msra.mxu0 0.0
    %849 = vmatpush.xpose.msra.mxu0 0.0
    %850 = vmatpush.xpose.msra.mxu0 0.0
    %851 = vmatpush.xpose.msra.mxu0 0.0
    %852 = vmatpush.xpose.msra.mxu0 0.0
    %853 = vmatpush.xpose.msra.mxu0 0.0
    %854 = vmatpush.xpose.msra.mxu0 0.0
    %855 = vmatpush.xpose.msra.mxu0 %v839
    %856 = vmatpush.xpose.msra.mxu0 %v837
    %857 = vmatmul.f32.gmra.mxu0 %v833
    %v858 = vpop.f32.mrf.mxu0
    %v859 = vadd.f32 0.0, %v858
    %860 = vmatmul.f32.gmra.mxu0 %v835
    %v861 = vpop.f32.mrf.mxu0
    %v862 = vadd.f32 0.0, %v861
    %863 = vdwg.mxu0
    %v864 = vmul.f32 %v859, 0.25
    %v865 = vmul.f32 %v862, 0.25
    %v866 = vadd.f32 %v864, %v164
    %v867 = vadd.f32 %v865, %v165
    %v868 = vsel %vm276, %v866, -inf
    %869 = vmax.xlane.f32.xlu0 %v868
    %v870 = vpop.xlane.xlu0 %869
    %v871 = vsel %vm276, %v867, -inf
    %872 = vmax.xlane.f32.xlu0 %v871
    %v873 = vpop.xlane.xlu0 %872
    %v874 = vsub.f32 %v866, %v870
    %v875 = vsub.f32 %v867, %v873
    %v876 = vmul.f32 %v874, 1.442695
    %v877 = vpow.pop %v876
    %v878 = vmul.f32 %v875, 1.442695
    %v879 = vpow.pop %v878
    %v880 = vsel %vm276, %v877, 0.0
    %881 = vadd.xlane.f32.xlu0 %v880
    %v882 = vpop.xlane.xlu0 %881
    %v883 = vsel %vm276, %v879, 0.0
    %884 = vadd.xlane.f32.xlu0 %v883
    %v885 = vpop.xlane.xlu0 %884
    %v886 = vrcp.pop %v882
    %v887 = vrcp.pop %v885
    %v888 = vmul.f32 %v877, %v886
    %v889 = vmul.f32 %v879, %v887
    %890 = vrot.lane.b32.xlu0 %v719, 32
    %v891 = vpop.permute.xlu0 %890
    %892 = vrot.lane.b32.xlu0 %v722, 32
    %v893 = vpop.permute.xlu0 %892
    %v897 = vsel %vm276, %v888, 0
    %v900 = vsel %vm276, %v889, 0
    %902 = vmatpush.msra.mxu0 0.0
    %903 = vmatpush.msra.mxu0 0.0
    %904 = vmatpush.msra.mxu0 0.0
    %905 = vmatpush.msra.mxu0 0.0
    %906 = vmatpush.msra.mxu0 0.0
    %907 = vmatpush.msra.mxu0 0.0
    %908 = vmatpush.msra.mxu0 0.0
    %909 = vmatpush.msra.mxu0 0.0
    %910 = vmatpush.msra.mxu0 0.0
    %911 = vmatpush.msra.mxu0 0.0
    %912 = vmatpush.msra.mxu0 0.0
    %913 = vmatpush.msra.mxu0 0.0
    %914 = vmatpush.msra.mxu0 0.0
    %915 = vmatpush.msra.mxu0 0.0
    %916 = vmatpush.msra.mxu0 %v893
    %917 = vmatpush.msra.mxu0 %v891
    %918 = vmatmul.f32.gmra.mxu0 %v897
    %v919 = vpop.f32.mrf.mxu0
    %v920 = vadd.f32 0.0, %v919
    %921 = vmatmul.f32.gmra.mxu0 %v900
    %v922 = vpop.f32.mrf.mxu0
    %v923 = vadd.f32 0.0, %v922
    %924 = vdwg.mxu0
    %v925 = vadd.f32 %v823, %v920
    %v926 = vadd.f32 %v824, %v923
    %v927 = vadd.f32 %v624, %v925
    %v928 = vadd.f32 %v625, %v926
    %v929 = vsel %vm174, %v927, 0.0
    %930 = vadd.xlane.f32.xlu0 %v929
    %v931 = vpop.xlane.xlu0 %930
    %v932 = vsel %vm174, %v928, 0.0
    %933 = vadd.xlane.f32.xlu0 %v932
    %v934 = vpop.xlane.xlu0 %933
    %v935 = vmul.f32 %v931, %v187
    %v936 = vmul.f32 %v934, %v187
    %v937 = vmul.f32 %v927, %v927
    %v938 = vmul.f32 %v928, %v928
    %v939 = vsel %vm174, %v937, 0.0
    %940 = vadd.xlane.f32.xlu0 %v939
    %v941 = vpop.xlane.xlu0 %940
    %v942 = vsel %vm174, %v938, 0.0
    %943 = vadd.xlane.f32.xlu0 %v942
    %v944 = vpop.xlane.xlu0 %943
    %v945 = vmul.f32 %v941, %v187
    %v946 = vmul.f32 %v944, %v187
    %v947 = vmul.f32 %v935, %v935
    %v948 = vmul.f32 %v936, %v936
    %v949 = vsub.f32 %v945, %v947
    %v950 = vsub.f32 %v946, %v948
    %v951 = vsub.f32 %v927, %v935
    %v952 = vsub.f32 %v928, %v936
    %v953 = vadd.f32 %v949, 1e-05
    %v954 = vadd.f32 %v950, 1e-05
    %v955 = vrsqrt.pop %v953
    %v956 = vmul.f32 %v955, %v953
    %v957 = vmul.f32 %v956, %v955
    %v958 = vmul.f32 0.5, %v957
    %v959 = vsub.f32 1.5, %v958
    %v960 = vmul.f32 %v955, %v959
    %vm961 = vweird.f32 %v953
    %vm962 = vweird.f32 %v955
    %vm963 = vmor %vm961, %vm962
    %v964 = vsel %vm963, %v955, %v960
    %v965 = vrsqrt.pop %v954
    %v966 = vmul.f32 %v965, %v954
    %v967 = vmul.f32 %v966, %v965
    %v968 = vmul.f32 0.5, %v967
    %v969 = vsub.f32 1.5, %v968
    %v970 = vmul.f32 %v965, %v969
    %vm971 = vweird.f32 %v954
    %vm972 = vweird.f32 %v965
    %vm973 = vmor %vm971, %vm972
    %v974 = vsel %vm973, %v965, %v970
    %v975 = vmul.f32 %v951, %v964
    %v976 = vmul.f32 %v952, %v974
    %v977 = vperm.slane %v629, 0
    %v978 = vmul.f32 %v975, %v977
    %v979 = vmul.f32 %v976, %v977
    %v980 = vperm.slane %v630, 0
    %v981 = vadd.f32 %v978, %v980
    %v982 = vadd.f32 %v979, %v980
    %v983 = vld [vmem:[%s689 + $0x20] sm:$0xff]
    %v984 = vld [vmem:[%s689 + $0x28] sm:$0xff]
    %v985 = vld [vmem:[%s689 + $0x30] sm:$0xff]
    %v986 = vld [vmem:[%s689 + $0x38] sm:$0xff]
    %v987 = vperm.slane %v632, 0
    %v989 = vsel %vm174, %v981, 0
    %v992 = vsel %vm174, %v982, 0
    %994 = vmatpush.msra.mxu0 0.0
    %995 = vmatpush.msra.mxu0 0.0
    %996 = vmatpush.msra.mxu0 0.0
    %997 = vmatpush.msra.mxu0 0.0
    %998 = vmatpush.msra.mxu0 0.0
    %999 = vmatpush.msra.mxu0 0.0
    %1000 = vmatpush.msra.mxu0 0.0
    %1001 = vmatpush.msra.mxu0 0.0
    %1002 = vmatpush.msra.mxu0 0.0
    %1003 = vmatpush.msra.mxu0 0.0
    %1004 = vmatpush.msra.mxu0 0.0
    %1005 = vmatpush.msra.mxu0 0.0
    %1006 = vmatpush.msra.mxu0 %v986
    %1007 = vmatpush.msra.mxu0 %v985
    %1008 = vmatpush.msra.mxu0 %v984
    %1009 = vmatpush.msra.mxu0 %v983
    %1010 = vmatmul.f32.gmra.mxu0 %v989
    %v1011 = vpop.f32.mrf.mxu0
    %v1012 = vadd.f32 %v987, %v1011
    %1013 = vmatmul.f32.gmra.mxu0 %v992
    %v1014 = vpop.f32.mrf.mxu0
    %v1015 = vadd.f32 %v987, %v1014
    %1016 = vdwg.mxu0
    %v1017 = vmul.f32 %v1012, 0.5
    %v1018 = vmul.f32 %v1015, 0.5
    %v1019 = vmul.f32 %v1012, 0.044715
    %v1020 = vmul.f32 %v1015, 0.044715
    %v1021 = vmul.f32 %v1019, %v1012
    %v1022 = vmul.f32 %v1020, %v1015
    %v1023 = vmul.f32 %v1021, %v1012
    %v1024 = vmul.f32 %v1022, %v1015
    %v1025 = vadd.f32 %v1012, %v1023
    %v1026 = vadd.f32 %v1015, %v1024
    %v1027 = vmul.f32 %v1025, 0.7978846
    %v1028 = vmul.f32 %v1026, 0.7978846
    %v1029 = vtanh.pop %v1027
    %v1030 = vtanh.pop %v1028
    %v1031 = vadd.f32 %v1029, 1.0
    %v1032 = vadd.f32 %v1030, 1.0
    %v1033 = vmul.f32 %v1017, %v1031
    %v1034 = vmul.f32 %v1018, %v1032
    %v1035 = vld [vmem:[%s689 + $0x40] sm:$0xff]
    %v1036 = vld [vmem:[%s689 + $0x48] sm:$0xff]
    %v1037 = vld [vmem:[%s689 + $0x50] sm:$0xff]
    %v1038 = vld [vmem:[%s689 + $0x58] sm:$0xff]
    %v1039 = vld [vmem:[%s689 + $0x60] sm:$0xff]
    %v1040 = vld [vmem:[%s689 + $0x68] sm:$0xff]
    %v1041 = vld [vmem:[%s689 + $0x70] sm:$0xff]
    %v1042 = vld [vmem:[%s689 + $0x78] sm:$0xff]
    %v1043 = vld [vmem:[%s689 + $0x80] sm:$0xff]
    %v1044 = vld [vmem:[%s689 + $0x88] sm:$0xff]
    %v1045 = vld [vmem:[%s689 + $0x90] sm:$0xff]
    %v1046 = vld [vmem:[%s689 + $0x98] sm:$0xff]
    %v1047 = vld [vmem:[%s689 + $0xa0] sm:$0xff]
    %v1048 = vld [vmem:[%s689 + $0xa8] sm:$0xff]
    %v1049 = vld [vmem:[%s689 + $0xb0] sm:$0xff]
    %v1050 = vld [vmem:[%s689 + $0xb8] sm:$0xff]
    %1051 = vmatpush.msra.mxu0 %v1050
    %1052 = vmatpush.msra.mxu0 %v1049
    %1053 = vmatpush.msra.mxu0 %v1048
    %1054 = vmatpush.msra.mxu0 %v1047
    %1055 = vmatpush.msra.mxu0 %v1046
    %1056 = vmatpush.msra.mxu0 %v1045
    %1057 = vmatpush.msra.mxu0 %v1044
    %1058 = vmatpush.msra.mxu0 %v1043
    %1059 = vmatpush.msra.mxu0 %v1042
    %1060 = vmatpush.msra.mxu0 %v1041
    %1061 = vmatpush.msra.mxu0 %v1040
    %1062 = vmatpush.msra.mxu0 %v1039
    %1063 = vmatpush.msra.mxu0 %v1038
    %1064 = vmatpush.msra.mxu0 %v1037
    %1065 = vmatpush.msra.mxu0 %v1036
    %1066 = vmatpush.msra.mxu0 %v1035
    %1067 = vmatmul.f32.gmra.mxu0 %v1033
    %v1068 = vpop.f32.mrf.mxu0
    %v1069 = vadd.f32 0.0, %v1068
    %1070 = vmatmul.f32.gmra.mxu0 %v1034
    %v1071 = vpop.f32.mrf.mxu0
    %v1072 = vadd.f32 0.0, %v1071
    %1073 = vdwg.mxu0
    %v1074 = vadd.f32 %v927, %v1069
    %v1075 = vadd.f32 %v928, %v1072
    %v1076 = vperm.slane %v633, 0
    %v1077 = vadd.f32 %v1074, %v1076
    %v1078 = vadd.f32 %v1075, %v1076
    %v1079 = vld [vmem:[#allocation7] sm:$0x3]
    %v1081 = vsel %vm276, %v1079, 0
    %1083 = vmatpush.msra.mxu0 0.0
    %1084 = vmatpush.msra.mxu0 0.0
    %1085 = vmatpush.msra.mxu0 0.0
    %1086 = vmatpush.msra.mxu0 0.0
    %1087 = vmatpush.msra.mxu0 0.0
    %1088 = vmatpush.msra.mxu0 0.0
    %1089 = vmatpush.msra.mxu0 0.0
    %1090 = vmatpush.msra.mxu0 0.0
    %1091 = vmatpush.msra.mxu0 0.0
    %1092 = vmatpush.msra.mxu0 0.0
    %1093 = vmatpush.msra.mxu0 0.0
    %1094 = vmatpush.msra.mxu0 0.0
    %1095 = vmatpush.msra.mxu0 0.0
    %1096 = vmatpush.msra.mxu0 0.0
    %1097 = vmatpush.msra.mxu0 %v1078
    %1098 = vmatpush.msra.mxu0 %v1077
    %1099 = vmatmul.f32.gmra.mxu0 %v1081
    %v1100 = vpop.f32.mrf.mxu0
    %v1101 = vadd.f32 0.0, %v1100
    %1102 = vdwg.mxu0
    %v1103 = vld [vmem:[#allocation14] sm:$0x1]
    %v1104 = vld [vmem:[#allocation14 + $0x1] sm:$0x1]
    %vm1105 = vcmask 254976
    %v1106 = vsel %vm1105, %v1101, 0.0
    %1107 = vadd.xlane.f32.xlu0 %v1106
    %v1108 = vpop.xlane.xlu0 %1107
    %v1109 = vmul.f32 %v1108, %v187
    %v1110 = vmul.f32 %v1101, %v1101
    %v1111 = vsel %vm1105, %v1110, 0.0
    %1112 = vadd.xlane.f32.xlu0 %v1111
    %v1113 = vpop.xlane.xlu0 %1112
    %v1114 = vmul.f32 %v1113, %v187
    %v1115 = vmul.f32 %v1109, %v1109
    %v1116 = vsub.f32 %v1114, %v1115
    %v1117 = vsub.f32 %v1101, %v1109
    %v1118 = vadd.f32 %v1116, 1e-05
    %v1119 = vrsqrt.pop %v1118
    %v1120 = vmul.f32 %v1119, %v1118
    %v1121 = vmul.f32 %v1120, %v1119
    %v1122 = vmul.f32 0.5, %v1121
    %v1123 = vsub.f32 1.5, %v1122
    %v1124 = vmul.f32 %v1119, %v1123
    %vm1125 = vweird.f32 %v1118
    %vm1126 = vweird.f32 %v1119
    %vm1127 = vmor %vm1125, %vm1126
    %v1128 = vsel %vm1127, %v1119, %v1124
    %v1129 = vmul.f32 %v1117, %v1128
    %v1130 = vperm.slane %v1103, 0
    %v1131 = vmul.f32 %v1129, %v1130
    %v1132 = vperm.slane %v1104, 0
    %v1133 = vadd.f32 %v1131, %v1132
    %v1134 = vld [vmem:[%s4] sm:$0x3]
    %v1135 = vld [vmem:[#allocation13] sm:$0x3f]
    %v1136 = vld [vmem:[#allocation14 + $0x2] sm:$0x1]
    %v1137 = vperm.slane %v1136, 0
    %vm1138 = vcmask 48128
    %v1140 = vsel %vm1138, %v1134, 0
    %vm1142 = vcmask 1045504
    %v1144 = vsel %vm1142, %v1135, 0
    %1146 = vmatpush.msra.mxu0 0.0
    %1147 = vmatpush.msra.mxu0 0.0
    %1148 = vmatpush.msra.mxu0 0.0
    %1149 = vmatpush.msra.mxu0 0.0
    %1150 = vmatpush.msra.mxu0 0.0
    %1151 = vmatpush.msra.mxu0 0.0
    %1152 = vmatpush.msra.mxu0 0.0
    %1153 = vmatpush.msra.mxu0 0.0
    %1154 = vmatpush.msra.mxu0 0.0
    %1155 = vmatpush.msra.mxu0 0.0
    %1156 = vmatpush.msra.mxu0 0.0
    %1157 = vmatpush.msra.mxu0 0.0
    %1158 = vmatpush.msra.mxu0 0.0
    %1159 = vmatpush.msra.mxu0 0.0
    %1160 = vmatpush.msra.mxu0 0.0
    %1161 = vmatpush.msra.mxu0 %v1144
    %1162 = vmatmul.f32.gmra.mxu0 %v1140
    %v1163 = vpop.f32.mrf.mxu0
    %v1164 = vadd.f32 %v1137, %v1163
    %1165 = vdwg.mxu0
    %v1166 = vmax.f32 %v1164, 0.0
    %v1167 = vld [vmem:[#allocation13 + $0x8] sm:$0xff]
    %v1168 = vld [vmem:[#allocation13 + $0x10] sm:$0xff]
    %v1169 = vld [vmem:[#allocation13 + $0x18] sm:$0xff]
    %v1170 = vld [vmem:[#allocation13 + $0x20] sm:$0xff]
    %v1171 = vld [vmem:[#allocation13 + $0x28] sm:$0xff]
    %v1172 = vld [vmem:[#allocation13 + $0x30] sm:$0xff]
    %v1174 = vsel %vm276, %v1166, 0
    %1176 = vmatpush.msra.mxu0 0.0
    %1177 = vmatpush.msra.mxu0 0.0
    %1178 = vmatpush.msra.mxu0 0.0
    %1179 = vmatpush.msra.mxu0 0.0
    %1180 = vmatpush.msra.mxu0 0.0
    %1181 = vmatpush.msra.mxu0 0.0
    %1182 = vmatpush.msra.mxu0 0.0
    %1183 = vmatpush.msra.mxu0 0.0
    %1184 = vmatpush.msra.mxu0 0.0
    %1185 = vmatpush.msra.mxu0 0.0
    %1186 = vmatpush.msra.mxu0 0.0
    %1187 = vmatpush.msra.mxu0 0.0
    %1188 = vmatpush.msra.mxu0 0.0
    %1189 = vmatpush.msra.mxu0 0.0
    %1190 = vmatpush.msra.mxu0 %v1172
    %1191 = vmatpush.msra.mxu0 %v1171
    %1192 = vmatmul.f32.gmra.mxu0 %v1174
    %v1193 = vpop.f32.mrf.mxu0
    %v1194 = vadd.f32 0.0, %v1193
    %1195 = vdwg.mxu0
    %v1197 = vsel %vm174, %v1133, 0
    %1199 = vmatpush.msra.mxu0 0.0
    %1200 = vmatpush.msra.mxu0 0.0
    %1201 = vmatpush.msra.mxu0 0.0
    %1202 = vmatpush.msra.mxu0 0.0
    %1203 = vmatpush.msra.mxu0 0.0
    %1204 = vmatpush.msra.mxu0 0.0
    %1205 = vmatpush.msra.mxu0 0.0
    %1206 = vmatpush.msra.mxu0 0.0
    %1207 = vmatpush.msra.mxu0 0.0
    %1208 = vmatpush.msra.mxu0 0.0
    %1209 = vmatpush.msra.mxu0 0.0
    %1210 = vmatpush.msra.mxu0 0.0
    %1211 = vmatpush.msra.mxu0 %v1170
    %1212 = vmatpush.msra.mxu0 %v1169
    %1213 = vmatpush.msra.mxu0 %v1168
    %1214 = vmatpush.msra.mxu0 %v1167
    %1215 = vmatmul.f32.gmra.mxu0 %v1197
    %v1216 = vpop.f32.mrf.mxu0
    %v1217 = vadd.f32 %v1194, %v1216
    %1218 = vdwg.mxu0
    %v1219 = vld [vmem:[#allocation14 + $0x3] sm:$0x1]
    %v1220 = vperm.slane %v1219, 0
    %v1221 = vadd.f32 %v1217, %v1220
    %v1222 = vmax.f32 %v1221, 0.0
    %v1223 = vld [vmem:[#allocation13 + $0x38] sm:$0xff]
    %v1224 = vld [vmem:[#allocation13 + $0x40] sm:$0xff]
    %v1225 = vld [vmem:[#allocation13 + $0x48] sm:$0xff]
    %v1226 = vld [vmem:[#allocation13 + $0x50] sm:$0xff]
    %v1227 = vld [vmem:[#allocation13 + $0x58] sm:$0xff]
    %v1228 = vld [vmem:[#allocation13 + $0x60] sm:$0xff]
    %v1229 = vld [vmem:[#allocation13 + $0x68] sm:$0xff]
    %v1230 = vld [vmem:[#allocation13 + $0x70] sm:$0xff]
    %v1231 = vld [vmem:[#allocation13 + $0x78] sm:$0xff]
    %v1232 = vld [vmem:[#allocation13 + $0x80] sm:$0xff]
    %v1233 = vld [vmem:[#allocation13 + $0x88] sm:$0xff]
    %v1234 = vld [vmem:[#allocation13 + $0x90] sm:$0xff]
    %v1235 = vld [vmem:[#allocation13 + $0x98] sm:$0xff]
    %v1236 = vld [vmem:[#allocation13 + $0xa0] sm:$0xff]
    %v1237 = vld [vmem:[#allocation13 + $0xa8] sm:$0xff]
    %v1238 = vld [vmem:[#allocation13 + $0xb0] sm:$0xff]
    %v1239 = vld [vmem:[#allocation14 + $0x4] sm:$0x1]
    %v1240 = vperm.slane %v1239, 0
    %1241 = vmatpush.msra.mxu0 %v1238
    %1242 = vmatpush.msra.mxu0 %v1237
    %1243 = vmatpush.msra.mxu0 %v1236
    %1244 = vmatpush.msra.mxu0 %v1235
    %1245 = vmatpush.msra.mxu0 %v1234
    %1246 = vmatpush.msra.mxu0 %v1233
    %1247 = vmatpush.msra.mxu0 %v1232
    %1248 = vmatpush.msra.mxu0 %v1231
    %1249 = vmatpush.msra.mxu0 %v1230
    %1250 = vmatpush.msra.mxu0 %v1229
    %1251 = vmatpush.msra.mxu0 %v1228
    %1252 = vmatpush.msra.mxu0 %v1227
    %1253 = vmatpush.msra.mxu0 %v1226
    %1254 = vmatpush.msra.mxu0 %v1225
    %1255 = vmatpush.msra.mxu0 %v1224
    %1256 = vmatpush.msra.mxu0 %v1223
    %1257 = vmatmul.f32.gmra.mxu0 %v1222
    %v1258 = vpop.f32.mrf.mxu0
    %v1259 = vadd.f32 %v1240, %v1258
    %1260 = vdwg.mxu0
    %vm1261 = vcmask 25600
    %1262 = vst.msk [vmem:[#allocation16] sm:$0x3] %vm1261, %v1259
    // Predicated region
    $region70: #{tpu_custom_call.1} parent=1 // pred_check
      _
    $region71: #{tpu_custom_call.1} parent=1 // pred_check_branch
      %1264 = sbr.rel (0) target = $region73
    $region72: #{tpu_custom_call.1} parent=1 // pred_region
      %1266 = vsyncadd [#allocation4], 0
      %s1268 = sshll.u32 [#allocation16], 4
      %s1269 = int_to_ptr.vmem [resolvable:$true] %s1268
      %s1270 = sshll.u32 %s9, 4
      %s1271 = int_to_ptr.hbm [resolvable:$true] %s1270
      %1273 = dma.vmem_to_hbm [thread:$0]  %s1269, 32, %s1271, [#allocation4]
    $region73: #{tpu_custom_call.1} parent=1 // pred_fallthru
      _
    // Predicated region
    $region74: #{tpu_custom_call.1} parent=1 // pred_check
      _
    $region75: #{tpu_custom_call.1} parent=1 // pred_check_branch
      %1275 = sbr.rel (0) target = $region77
    $region76: #{tpu_custom_call.1} parent=1 // pred_region
      %1277 = dma.done [#allocation4], 32
    $region77: #{tpu_custom_call.1} parent=1 // pred_fallthru
      _
    %1278 = vsyncpa [#allocation3], 1
    %1279 = vsyncpa [#allocation6], 1
    %1280 = vsyncpa [#allocation9], 1
    %1281 = vsyncpa [#allocation12], 1
    %1282 = vsyncpa [#allocation15], 1
    %1283 = vsyncpa [#allocation4], 1

</llo_original>
